<compile_context>
chip_gen: v7x
topology: tpu7x:2x2x1
jax: 0.10.0
libtpu: 0.0.40
codegen_flags: <defaults>
</compile_context>

<pallas_src>
import functools
import math

import numpy as np
import jax
import jax.numpy as jnp
from jax import lax
from jax.experimental import pallas as pl
from jax.experimental.pallas import tpu as pltpu

_NEG_BIG = -0.7 * float(np.finfo(np.float32).max)   # "-inf" that stays finite


def _round_up(x, m):
    return (x + m - 1) // m * m


# ----------------------------------------------------------------------------
# Kernel: one (batch*head-group, q-tile, kv-tile) triple per grid step.
#   q_ref    : [1, G, tq, D]   bf16   (resident across the kv axis)
#   k_ref    : [1, G, D, tk]   bf16   (pre-transposed K)
#   v_ref    : [1, G, tk, D]   bf16
#   mask_ref : [1, tq, tk] or [1, G, tq, tk]  bf16 additive (optional)
#   o_ref    : [1, G, tq, D]   out dtype (written at the last kv tile)
#   scratch  : m [G,tq,1] f32, l [G,tq,1] f32, acc [G,tq,D] f32
# ----------------------------------------------------------------------------
def _mha_flash_kernel(*refs, scale, is_causal, tq, tk, kv_len, kv_padded,
                      mask_mode):
    if mask_mode == "none":
        q_ref, k_ref, v_ref, o_ref, m_sc, l_sc, acc_sc = refs
        mask_ref = None
    else:
        q_ref, k_ref, v_ref, mask_ref, o_ref, m_sc, l_sc, acc_sc = refs

    qi = pl.program_id(1)
    ki = pl.program_id(2)
    n_kv = pl.num_programs(2)

    @pl.when(ki == 0)
    def _init():
        m_sc[...] = jnp.full_like(m_sc, -jnp.inf)
        l_sc[...] = jnp.zeros_like(l_sc)
        acc_sc[...] = jnp.zeros_like(acc_sc)

    def _compute():
        q = q_ref[0]                                   # [G, tq, D] bf16
        k = k_ref[0]                                   # [G, D, tk] bf16
        v = v_ref[0]                                   # [G, tk, D] bf16

        # fold 1/sqrt(D) into q: tq*D VPU work instead of tq*tk
        qs = q * jnp.asarray(scale, q.dtype)

        # QK^T on the MXU; K is already [D, tk] so no transpose is needed.
        s = jnp.einsum('gqd,gdk->gqk', qs, k,
                       preferred_element_type=jnp.float32)   # [G, tq, tk] f32

        if mask_mode == "shared":
            s = s + mask_ref[0].astype(jnp.float32)[None, :, :]
        elif mask_mode == "per_head":
            s = s + mask_ref[0].astype(jnp.float32)

        neg = jnp.asarray(_NEG_BIG, jnp.float32)
        if kv_padded:
            cols = ki * tk + lax.broadcasted_iota(jnp.int32, s.shape, 2)
            s = jnp.where(cols < kv_len, s, neg)
        if is_causal:
            rows = qi * tq + lax.broadcasted_iota(jnp.int32, s.shape, 1)
            cols = ki * tk + lax.broadcasted_iota(jnp.int32, s.shape, 2)
            s = jnp.where(cols <= rows, s, neg)

        # online softmax update (all f32)
        m_prev = m_sc[...]                                        # [G, tq, 1]
        m_new = jnp.maximum(m_prev, jnp.max(s, axis=-1, keepdims=True))
        alpha = jnp.exp(m_prev - m_new)
        p = jnp.exp(s - m_new)                                    # un-normalized

        l_sc[...] = alpha * l_sc[...] + jnp.sum(p, axis=-1, keepdims=True)
        acc_sc[...] = alpha * acc_sc[...] + jnp.einsum(
            'gqk,gkd->gqd', p.astype(v.dtype), v,
            preferred_element_type=jnp.float32)
        m_sc[...] = m_new

    if is_causal:
        # skip KV tiles that lie entirely above the causal diagonal
        @pl.when(ki * tk <= qi * tq + (tq - 1))
        def _():
            _compute()
    else:
        _compute()

    @pl.when(ki == n_kv - 1)
    def _finalize():
        # deferred normalization: scale the [G, tq, D] accumulator once
        inv = pl.reciprocal(l_sc[...], approx=True)   # eval path; exact not needed
        o_ref[0] = (acc_sc[...] * inv).astype(o_ref.dtype)


# ----------------------------------------------------------------------------
# Wrapper: '(d h)' head-split layout plumbing, padding, specs, pallas_call.
# ----------------------------------------------------------------------------
def mha_attention_pallas(q, k, v, attn_mask=None, *, n_heads=4, is_causal=False,
                         q_tile=128, kv_tile=256, matmul_dtype=jnp.bfloat16):
    # TODO(synk): dropout (dropout_level > 0 while training) is not implemented;
    # this is the eval path (dropout_p = 0), matching module.eval().
    assert q.shape[-1] == k.shape[-1]
    assert k.shape[-2] == v.shape[-2]
    B, N, C = q.shape
    M = k.shape[1]
    H = n_heads
    assert C % H == 0
    D = C // H
    out_dtype = q.dtype

    # ---- head grouping: smallest divisor G of H with G*D >= 128 ------------
    target = max(1, -(-128 // D))          # ceil(128 / D)
    G = H
    for g in range(1, H + 1):
        if H % g == 0 and g >= target:
            G = g
            break
    n_grp = H // G
    BG = B * n_grp

    # ---- tiling (pad instead of collapsing to one giant block) ------------
    tq = int(q_tile) if q_tile and q_tile > 0 else 128
    tq = _round_up(min(tq, _round_up(N, 8)), 8)
    N_pad = _round_up(N, tq)
    n_q = N_pad // tq

    tk = int(kv_tile) if kv_tile and kv_tile > 0 else 256
    tk = _round_up(min(tk, _round_up(M, 128)), 128)
    M_pad = _round_up(M, tk)
    n_kv = M_pad // tk

    # ---- '(d h)' split + padding (pure layout work, done by XLA) ----------
    def split_heads(x, L):    # [B, L, C] -> [B, H, L, D]   (h is the fast axis)
        return x.reshape(B, L, D, H).transpose(0, 3, 1, 2)

    def pad_axis(x, axis, new_size):
        pad = new_size - x.shape[axis]
        if pad == 0:
            return x
        widths = [(0, 0)] * x.ndim
        widths[axis] = (0, pad)
        return jnp.pad(x, widths)

    qh = split_heads(q, N)
    kh = split_heads(k, M)
    vh = split_heads(v, M)

    qh = pad_axis(qh, 2, N_pad).astype(matmul_dtype).reshape(BG, G, N_pad, D)
    # K stored transposed [.., D, M_pad]: lane-dense DMAs when D < 128 and no
    # in-kernel transpose for the QK^T contraction.
    kh = pad_axis(kh, 2, M_pad).transpose(0, 1, 3, 2).astype(matmul_dtype)
    kh = kh.reshape(BG, G, D, M_pad)
    vh = pad_axis(vh, 2, M_pad).astype(matmul_dtype).reshape(BG, G, M_pad, D)

    # ---- mask: keep head-broadcast masks de-duplicated + bf16 -------------
    mask_mode = "none"
    mask_arr = None
    if attn_mask is not None:
        m_ = attn_mask
        if m_.dtype == jnp.bool_:
            m_ = jnp.where(m_, jnp.float32(0.0), jnp.float32(_NEG_BIG))
        m_ = m_.astype(jnp.float32)
        while m_.ndim < 4:
            m_ = m_[None]
        if m_.shape[1] == 1:                      # broadcasts over heads
            mask_mode = "shared"
            m_ = jnp.broadcast_to(m_[:, 0], (B, N, M))
            m_ = pad_axis(pad_axis(m_, 1, N_pad), 2, M_pad)
            mask_arr = m_.astype(jnp.bfloat16)                    # [B, Np, Mp]
        else:                                     # genuinely per-head
            mask_mode = "per_head"
            m_ = jnp.broadcast_to(m_, (B, H, N, M))
            m_ = pad_axis(pad_axis(m_, 2, N_pad), 3, M_pad)
            mask_arr = m_.reshape(BG, G, N_pad, M_pad).astype(jnp.bfloat16)

    # ---- grid & specs ------------------------------------------------------
    grid = (BG, n_q, n_kv)

    q_spec = pl.BlockSpec((1, G, tq, D), lambda bg, qi, ki: (bg, 0, qi, 0))
    k_spec = pl.BlockSpec((1, G, D, tk), lambda bg, qi, ki: (bg, 0, 0, ki))
    v_spec = pl.BlockSpec((1, G, tk, D), lambda bg, qi, ki: (bg, 0, ki, 0))
    o_spec = pl.BlockSpec((1, G, tq, D), lambda bg, qi, ki: (bg, 0, qi, 0))

    in_arrays = [qh, kh, vh]
    in_specs = [q_spec, k_spec, v_spec]
    if mask_mode == "shared":
        if n_grp == 1:
            mask_map = lambda bg, qi, ki: (bg, qi, ki)
        else:
            mask_map = lambda bg, qi, ki: (bg // n_grp, qi, ki)
        in_arrays.append(mask_arr)
        in_specs.append(pl.BlockSpec((1, tq, tk), mask_map))
    elif mask_mode == "per_head":
        in_arrays.append(mask_arr)
        in_specs.append(
            pl.BlockSpec((1, G, tq, tk), lambda bg, qi, ki: (bg, 0, qi, ki)))

    scratch_shapes = [
        pltpu.VMEM((G, tq, 1), jnp.float32),      # running max
        pltpu.VMEM((G, tq, 1), jnp.float32),      # running sum
        pltpu.VMEM((G, tq, D), jnp.float32),      # running PV accumulator
    ]

    kernel = functools.partial(
        _mha_flash_kernel,
        scale=1.0 / math.sqrt(D),
        is_causal=bool(is_causal),
        tq=tq, tk=tk,
        kv_len=M,
        kv_padded=(M_pad != M),
        mask_mode=mask_mode)

    # ---- VMEM budget: real block footprint, clamped to 3/4 of capacity ----
    isz = jnp.dtype(matmul_dtype).itemsize
    osz = jnp.dtype(out_dtype).itemsize
    blk = (G * tq * D + G * D * tk + G * tk * D) * isz + G * tq * D * osz
    if mask_mode == "shared":
        blk += tq * tk * 2
    elif mask_mode == "per_head":
        blk += G * tq * tk * 2
    scratch_bytes = G * tq * (2 * 128 + max(D, 128)) * 4      # lane-padded
    temps = 8 * G * tq * tk * 4                               # f32 s/p temps
    needed = 2 * blk + scratch_bytes + temps + (4 << 20)
    try:
        vmem_cap = int(pltpu.get_tpu_info().vmem_capacity_bytes)
    except Exception:
        vmem_cap = 64 << 20
    vmem_limit = int(min(max(needed, 8 << 20), (vmem_cap * 3) // 4))

    mask_bytes = int(mask_arr.size) * 2 if mask_arr is not None else 0
    cost = pl.CostEstimate(
        flops=4 * B * H * N * M * D,
        transcendentals=B * H * N * M,
        bytes_accessed=int((qh.size + kh.size + vh.size) * isz
                           + BG * G * N_pad * D * osz + mask_bytes))

    out = pl.pallas_call(
        kernel,
        out_shape=jax.ShapeDtypeStruct((BG, G, N_pad, D), out_dtype),
        grid=grid,
        in_specs=in_specs,
        out_specs=o_spec,
        scratch_shapes=scratch_shapes,
        compiler_params=pltpu.CompilerParams(
            dimension_semantics=("parallel", "parallel", "arbitrary"),
            vmem_limit_bytes=vmem_limit),
        cost_estimate=cost,
    )(*in_arrays)

    # 'bs h n d -> bs n (d h)' (drop query padding)
    out = out.reshape(B, H, N_pad, D)[:, :, :N, :]
    out = out.transpose(0, 2, 3, 1).reshape(B, N, C)
    return out.astype(out_dtype)


# ----------------------------------------------------------------------------
# Pure-JAX reference (mirrors the PyTorch forward) for validation.
# ----------------------------------------------------------------------------
def mha_attention_reference(q, k, v, n_heads, attn_mask=None, is_causal=False):
    B, N, C = q.shape
    M = k.shape[1]
    H = n_heads
    D = C // H

    def split_dh(x):  # 'bs n (d h) -> bs h n d'
        return x.reshape(x.shape[0], x.shape[1], D, H).transpose(0, 3, 1, 2)

    qh, kh, vh = split_dh(q), split_dh(k), split_dh(v)
    logits = jnp.einsum('bhnd,bhmd->bhnm', qh, kh) / math.sqrt(D)
    if attn_mask is not None:
        if attn_mask.dtype == jnp.bool_:
            logits = jnp.where(attn_mask, logits, jnp.finfo(jnp.float32).min)
        else:
            logits = logits + attn_mask
    if is_causal:
        causal = np.tril(np.ones((N, M), dtype=bool))
        logits = jnp.where(causal[None, None], logits,
                           jnp.finfo(jnp.float32).min)
    p = jax.nn.softmax(logits, axis=-1)
    o = jnp.einsum('bhnm,bhmd->bhnd', p, vh)
    return o.transpose(0, 2, 3, 1).reshape(B, N, C)   # 'bs h n d -> bs n (d h)'


if __name__ == "__main__":
    B, N, M, H, D = 2, 16, 8, 4, 8        # hidden C = H*D = 32
    C = H * D
    key = jax.random.PRNGKey(0)
    kq, kk, kv_, km = jax.random.split(key, 4)
    q = jax.random.normal(kq, (B, N, C), jnp.float32)
    k = jax.random.normal(kk, (B, M, C), jnp.float32)
    v = jax.random.normal(kv_, (B, M, C), jnp.float32)

    # default path: attn_mask=None, is_causal=False, eval (no dropout)
    out = jax.block_until_ready(mha_attention_pallas(q, k, v, n_heads=H))
    ref = mha_attention_reference(q, k, v, H)
    np.testing.assert_allclose(np.asarray(out), np.asarray(ref),
                               rtol=2e-2, atol=2e-2)

    # additive float mask (broadcast over heads)
    mask = 0.5 * jax.random.normal(km, (B, 1, N, M), jnp.float32)
    out_m = jax.block_until_ready(
        mha_attention_pallas(q, k, v, attn_mask=mask, n_heads=H))
    ref_m = mha_attention_reference(q, k, v, H, attn_mask=mask)
    np.testing.assert_allclose(np.asarray(out_m), np.asarray(ref_m),
                               rtol=2e-2, atol=2e-2)

    # causal path
    out_c = jax.block_until_ready(
        mha_attention_pallas(q, k, v, n_heads=H, is_causal=True))
    ref_c = mha_attention_reference(q, k, v, H, is_causal=True)
    np.testing.assert_allclose(np.asarray(out_c), np.asarray(ref_c),
                               rtol=2e-2, atol=2e-2)

    print("KERNEL_OK")
</pallas_src>

<mosaic_0001>
module attributes {stable_mosaic.version = 11 : i64} {
  func.func @_mha_flash_kernel(%arg0: i32, %arg1: i32, %arg2: i32, %arg3: memref<1x4x16x8xbf16, #tpu.memory_space<vmem>>, %arg4: memref<1x4x8x128xbf16, #tpu.memory_space<vmem>>, %arg5: memref<1x4x128x8xbf16, #tpu.memory_space<vmem>>, %arg6: memref<1x4x16x8xf32, #tpu.memory_space<vmem>>, %arg7: memref<4x16x1xf32, #tpu.memory_space<vmem>>, %arg8: memref<4x16x1xf32, #tpu.memory_space<vmem>>, %arg9: memref<4x16x8xf32, #tpu.memory_space<vmem>>) attributes {dimension_semantics = [#tpu.dimension_semantics<parallel>, #tpu.dimension_semantics<parallel>, #tpu.dimension_semantics<arbitrary>], iteration_bounds = array<i64: 2, 1, 1>, scalar_prefetch = 0 : i64, scratch_operands = 3 : i64, tpu.core_type = #tpu.core_type<tc>, window_params = [{transform_indices = @transform_0, window_bounds = array<i64: 1, 4, 16, 8>}, {transform_indices = @transform_1, window_bounds = array<i64: 1, 4, 8, 128>}, {transform_indices = @transform_2, window_bounds = array<i64: 1, 4, 128, 8>}, {transform_indices = @transform_3, window_bounds = array<i64: 1, 4, 16, 8>}]} {
    %c0_i32 = arith.constant 0 : i32
    %0 = arith.cmpi eq, %arg2, %c0_i32 : i32
    %1 = arith.extui %0 : i1 to i32
    %c0_i32_0 = arith.constant 0 : i32
    %2 = arith.cmpi ne, %1, %c0_i32_0 : i32
    scf.if %2 {
      %cst_37 = arith.constant 0xFF800000 : f32
      %46 = vector.broadcast %cst_37 : f32 to vector<4x16x1xf32>
      %c0_38 = arith.constant 0 : index
      %c0_39 = arith.constant 0 : index
      %c0_40 = arith.constant 0 : index
      %47 = vector.load %arg7[%c0_38, %c0_39, %c0_40] : memref<4x16x1xf32, #tpu.memory_space<vmem>>, vector<4x16x1xf32>
      tpu.vector_store %arg7[%c0_38, %c0_39, %c0_40], %46 {strides = array<i32>} : memref<4x16x1xf32, #tpu.memory_space<vmem>>, vector<4x16x1xf32>,
      %cst_41 = arith.constant 0.000000e+00 : f32
      %48 = vector.broadcast %cst_41 : f32 to vector<4x16x1xf32>
      %c0_42 = arith.constant 0 : index
      %c0_43 = arith.constant 0 : index
      %c0_44 = arith.constant 0 : index
      %49 = vector.load %arg8[%c0_42, %c0_43, %c0_44] : memref<4x16x1xf32, #tpu.memory_space<vmem>>, vector<4x16x1xf32>
      tpu.vector_store %arg8[%c0_42, %c0_43, %c0_44], %48 {strides = array<i32>} : memref<4x16x1xf32, #tpu.memory_space<vmem>>, vector<4x16x1xf32>,
      %cst_45 = arith.constant 0.000000e+00 : f32
      %50 = vector.broadcast %cst_45 : f32 to vector<4x16x8xf32>
      %c0_46 = arith.constant 0 : index
      %c0_47 = arith.constant 0 : index
      %c0_48 = arith.constant 0 : index
      %51 = vector.load %arg9[%c0_46, %c0_47, %c0_48] : memref<4x16x8xf32, #tpu.memory_space<vmem>>, vector<4x16x8xf32>
      tpu.vector_store %arg9[%c0_46, %c0_47, %c0_48], %50 {strides = array<i32>} : memref<4x16x8xf32, #tpu.memory_space<vmem>>, vector<4x16x8xf32>,
    } else {
    }
    %c0 = arith.constant 0 : index
    %c0_1 = arith.constant 0 : index
    %c0_2 = arith.constant 0 : index
    %c0_3 = arith.constant 0 : index
    %3 = vector.load %arg3[%c0, %c0_1, %c0_2, %c0_3] : memref<1x4x16x8xbf16, #tpu.memory_space<vmem>>, vector<1x4x16x8xbf16>
    %4 = vector.shape_cast %3 : vector<1x4x16x8xbf16> to vector<4x16x8xbf16>
    %c0_4 = arith.constant 0 : index
    %c0_5 = arith.constant 0 : index
    %c0_6 = arith.constant 0 : index
    %c0_7 = arith.constant 0 : index
    %5 = vector.load %arg4[%c0_4, %c0_5, %c0_6, %c0_7] : memref<1x4x8x128xbf16, #tpu.memory_space<vmem>>, vector<1x4x8x128xbf16>
    %6 = vector.shape_cast %5 : vector<1x4x8x128xbf16> to vector<4x8x128xbf16>
    %c0_8 = arith.constant 0 : index
    %c0_9 = arith.constant 0 : index
    %c0_10 = arith.constant 0 : index
    %c0_11 = arith.constant 0 : index
    %7 = vector.load %arg5[%c0_8, %c0_9, %c0_10, %c0_11] : memref<1x4x128x8xbf16, #tpu.memory_space<vmem>>, vector<1x4x128x8xbf16>
    %8 = vector.shape_cast %7 : vector<1x4x128x8xbf16> to vector<4x128x8xbf16>
    %cst = arith.constant 3.535160e-01 : bf16
    %9 = vector.broadcast %cst : bf16 to vector<4x16x8xbf16>
    %10 = arith.mulf %4, %9 : vector<4x16x8xbf16>
    "tpu.trace_start"() <{level = 10 : i32, message = "gqd,gdk->gqk"}> : () -> ()
    %cst_12 = arith.constant dense<0.000000e+00> : vector<4x16x128xf32>
    %11 = tpu.matmul %10, %6, %cst_12 {dimension_numbers = #tpu.dot_dimension_numbers<[2], [1], [1], [2], [0, 0, 0, 1, 1, 2], [0], [0]>} : vector<4x16x8xbf16>, vector<4x8x128xbf16>, vector<4x16x128xf32> -> vector<4x16x128xf32>
    "tpu.trace_stop"() : () -> ()
    %c128_i32 = arith.constant 128 : i32
    %12 = arith.muli %arg2, %c128_i32 : i32
    %13 = tpu.iota {dimensions = array<i32: 2>} : vector<4x16x128xi32>
    %14 = vector.broadcast %12 : i32 to vector<4x16x128xi32>
    %15 = arith.addi %14, %13 : vector<4x16x128xi32>
    %c8_i32 = arith.constant 8 : i32
    %16 = vector.broadcast %c8_i32 : i32 to vector<4x16x128xi32>
    %17 = arith.cmpi slt, %15, %16 : vector<4x16x128xi32>
    %cst_13 = arith.constant -2.38197633E+38 : f32
    %18 = vector.broadcast %cst_13 : f32 to vector<4x16x128xf32>
    %19 = arith.select %17, %11, %18 : vector<4x16x128xi1>, vector<4x16x128xf32>
    %c0_14 = arith.constant 0 : index
    %c0_15 = arith.constant 0 : index
    %c0_16 = arith.constant 0 : index
    %20 = vector.load %arg7[%c0_14, %c0_15, %c0_16] : memref<4x16x1xf32, #tpu.memory_space<vmem>>, vector<4x16x1xf32>
    %cst_17 = arith.constant dense<0xFF800000> : vector<4x16xf32>
    %21 = vector.multi_reduction <maximumf>, %19, %cst_17 [2] : vector<4x16x128xf32> to vector<4x16xf32>
    %22 = vector.shape_cast %21 : vector<4x16xf32> to vector<4x16x1xf32>
    %23 = arith.maximumf %20, %22 : vector<4x16x1xf32>
    %24 = arith.subf %20, %23 : vector<4x16x1xf32>
    %25 = math.exp %24 : vector<4x16x1xf32>
    %26 = vector.broadcast %23 : vector<4x16x1xf32> to vector<4x16x128xf32>
    %27 = arith.subf %19, %26 : vector<4x16x128xf32>
    %28 = math.exp %27 : vector<4x16x128xf32>
    %c0_18 = arith.constant 0 : index
    %c0_19 = arith.constant 0 : index
    %c0_20 = arith.constant 0 : index
    %29 = vector.load %arg8[%c0_18, %c0_19, %c0_20] : memref<4x16x1xf32, #tpu.memory_space<vmem>>, vector<4x16x1xf32>
    %30 = arith.mulf %25, %29 : vector<4x16x1xf32>
    %cst_21 = arith.constant dense<0.000000e+00> : vector<4x16xf32>
    %31 = vector.multi_reduction <add>, %28, %cst_21 [2] : vector<4x16x128xf32> to vector<4x16xf32>
    %32 = vector.shape_cast %31 : vector<4x16xf32> to vector<4x16x1xf32>
    %33 = arith.addf %30, %32 : vector<4x16x1xf32>
    %c0_22 = arith.constant 0 : index
    %c0_23 = arith.constant 0 : index
    %c0_24 = arith.constant 0 : index
    %34 = vector.load %arg8[%c0_22, %c0_23, %c0_24] : memref<4x16x1xf32, #tpu.memory_space<vmem>>, vector<4x16x1xf32>
    tpu.vector_store %arg8[%c0_22, %c0_23, %c0_24], %33 {strides = array<i32>} : memref<4x16x1xf32, #tpu.memory_space<vmem>>, vector<4x16x1xf32>,
    %c0_25 = arith.constant 0 : index
    %c0_26 = arith.constant 0 : index
    %c0_27 = arith.constant 0 : index
    %35 = vector.load %arg9[%c0_25, %c0_26, %c0_27] : memref<4x16x8xf32, #tpu.memory_space<vmem>>, vector<4x16x8xf32>
    %36 = vector.broadcast %25 : vector<4x16x1xf32> to vector<4x16x8xf32>
    %37 = arith.mulf %36, %35 : vector<4x16x8xf32>
    %38 = arith.truncf %28 : vector<4x16x128xf32> to vector<4x16x128xbf16>
    "tpu.trace_start"() <{level = 10 : i32, message = "gqk,gkd->gqd"}> : () -> ()
    %cst_28 = arith.constant dense<0.000000e+00> : vector<4x16x8xf32>
    %39 = tpu.matmul %38, %8, %cst_28 {dimension_numbers = #tpu.dot_dimension_numbers<[2], [1], [1], [2], [0, 0, 0, 1, 1, 2], [0], [0]>} : vector<4x16x128xbf16>, vector<4x128x8xbf16>, vector<4x16x8xf32> -> vector<4x16x8xf32>
    "tpu.trace_stop"() : () -> ()
    %40 = arith.addf %37, %39 : vector<4x16x8xf32>
    %c0_29 = arith.constant 0 : index
    %c0_30 = arith.constant 0 : index
    %c0_31 = arith.constant 0 : index
    %41 = vector.load %arg9[%c0_29, %c0_30, %c0_31] : memref<4x16x8xf32, #tpu.memory_space<vmem>>, vector<4x16x8xf32>
    tpu.vector_store %arg9[%c0_29, %c0_30, %c0_31], %40 {strides = array<i32>} : memref<4x16x8xf32, #tpu.memory_space<vmem>>, vector<4x16x8xf32>,
    %c0_32 = arith.constant 0 : index
    %c0_33 = arith.constant 0 : index
    %c0_34 = arith.constant 0 : index
    %42 = vector.load %arg7[%c0_32, %c0_33, %c0_34] : memref<4x16x1xf32, #tpu.memory_space<vmem>>, vector<4x16x1xf32>
    tpu.vector_store %arg7[%c0_32, %c0_33, %c0_34], %23 {strides = array<i32>} : memref<4x16x1xf32, #tpu.memory_space<vmem>>, vector<4x16x1xf32>,
    %c0_i32_35 = arith.constant 0 : i32
    %43 = arith.cmpi eq, %arg2, %c0_i32_35 : i32
    %44 = arith.extui %43 : i1 to i32
    %c0_i32_36 = arith.constant 0 : i32
    %45 = arith.cmpi ne, %44, %c0_i32_36 : i32
    scf.if %45 {
      %c0_37 = arith.constant 0 : index
      %c0_38 = arith.constant 0 : index
      %c0_39 = arith.constant 0 : index
      %46 = vector.load %arg8[%c0_37, %c0_38, %c0_39] : memref<4x16x1xf32, #tpu.memory_space<vmem>>, vector<4x16x1xf32>
      %47 = tpu.reciprocal %46 {approx = true} : vector<4x16x1xf32> -> vector<4x16x1xf32>
      %c0_40 = arith.constant 0 : index
      %c0_41 = arith.constant 0 : index
      %c0_42 = arith.constant 0 : index
      %48 = vector.load %arg9[%c0_40, %c0_41, %c0_42] : memref<4x16x8xf32, #tpu.memory_space<vmem>>, vector<4x16x8xf32>
      %49 = vector.broadcast %47 : vector<4x16x1xf32> to vector<4x16x8xf32>
      %50 = arith.mulf %48, %49 : vector<4x16x8xf32>
      %c0_43 = arith.constant 0 : index
      %c0_44 = arith.constant 0 : index
      %c0_45 = arith.constant 0 : index
      %c0_46 = arith.constant 0 : index
      %51 = vector.load %arg6[%c0_43, %c0_44, %c0_45, %c0_46] : memref<1x4x16x8xf32, #tpu.memory_space<vmem>>, vector<1x4x16x8xf32>
      %52 = vector.shape_cast %51 : vector<1x4x16x8xf32> to vector<4x16x8xf32>
      %53 = vector.shape_cast %50 : vector<4x16x8xf32> to vector<1x4x16x8xf32>
      tpu.vector_store %arg6[%c0_43, %c0_44, %c0_45, %c0_46], %53 {strides = array<i32>} : memref<1x4x16x8xf32, #tpu.memory_space<vmem>>, vector<1x4x16x8xf32>,
    } else {
    }
    return
  }
  func.func @transform_0(%arg0: i32, %arg1: i32, %arg2: i32) -> (i32, i32, i32, i32) {
    %c0_i32 = arith.constant 0 : i32
    %c0_i32_0 = arith.constant 0 : i32
    %c0_i32_1 = arith.constant 0 : i32
    return %arg0, %c0_i32, %arg1, %c0_i32_0 : i32, i32, i32, i32
  }
  func.func @transform_1(%arg0: i32, %arg1: i32, %arg2: i32) -> (i32, i32, i32, i32) {
    %c0_i32 = arith.constant 0 : i32
    %c0_i32_0 = arith.constant 0 : i32
    %c0_i32_1 = arith.constant 0 : i32
    return %arg0, %c0_i32, %c0_i32_0, %arg2 : i32, i32, i32, i32
  }
  func.func @transform_2(%arg0: i32, %arg1: i32, %arg2: i32) -> (i32, i32, i32, i32) {
    %c0_i32 = arith.constant 0 : i32
    %c0_i32_0 = arith.constant 0 : i32
    %c0_i32_1 = arith.constant 0 : i32
    return %arg0, %c0_i32, %arg2, %c0_i32_0 : i32, i32, i32, i32
  }
  func.func @transform_3(%arg0: i32, %arg1: i32, %arg2: i32) -> (i32, i32, i32, i32) {
    %c0_i32 = arith.constant 0 : i32
    %c0_i32_0 = arith.constant 0 : i32
    %c0_i32_1 = arith.constant 0 : i32
    return %arg0, %c0_i32, %arg1, %c0_i32_0 : i32, i32, i32, i32
  }
}

</mosaic_0001>

<llo_original>
// kernel: tpu_custom_call.1
$region0: #{tpu_custom_call.1}
  #allocation0 [shape = 'u32[]', space=smem, size = 0x4, offset = 0x4, fixed_abs, tag = 'smem constant byte address 0x4 - core index']
  #allocation1 [shape = 'u32[144,128]{1,0:T(1,128)}', space=vmem, size = 0x12000, scoped, tag = 'internal scratch']
  #allocation2 [shape = 'f32[4,16,1]{2,1,0:T(8,128)}', space=vmem, size = 0x8000, scoped, tag = 'scratch operand']
  #allocation3 [shape = 'f32[4,16,1]{2,1,0:T(8,128)}', space=vmem, size = 0x8000, scoped, tag = 'scratch operand']
  #allocation4 [shape = 'f32[4,16,8]{2,1,0:T(8,128)}', space=vmem, size = 0x8000, scoped, tag = 'scratch operand']
  %s0 = inlined_call_operand.vmem [shape: bf16[2,4,16,8], index: 0, kind: input, shape index: {}]
  %s1 = inlined_call_operand.vmem [shape: bf16[2,4,8,128], index: 1, kind: input, shape index: {}]
  %s2 = inlined_call_operand.vmem [shape: bf16[2,4,128,8], index: 2, kind: input, shape index: {}]
  %s3 = inlined_call_operand.vmem [shape: f32[2,4,16,8], index: 3, kind: output, shape index: {}]
  %s4 = sld [smem:[#allocation0]]
  $region53: #{tpu_custom_call.1} parent=0
    _
  %s6 = ssub.s32 1, %s4
  %s7 = scalar_select 0, %s6, %s4
  loop: start=0, step=1, limit=4
  $region2: #{tpu_custom_call.1} parent=0 // loop_pre_header
    _
  $region3: #{tpu_custom_call.1} parent=0 // loop_header
    %s9 = sphi 0, %s13
    %p10 = scmp.ge.s32.totalorder %s9, 4
    %s16 = sphi 0, %s35
    %s17 = sphi 0, %s31
    %s18 = sphi 0, %s27
    %s19 = sphi 0, %s16
    %s20 = sphi 0, %s17
    %s21 = sphi 0, %s18
    %s22 = sphi 0, %s19
    %s23 = sphi 0, %s20
    %s24 = sphi 0, %s21
    %s40 = sphi 0, %s42
    %s43 = sphi 0, %s40
    %s44 = sphi 0, %s43
    %s60 = sphi 0, %s44
    %s68 = sphi 0, %s70
    %s71 = sphi 0, %s68
    %s72 = sphi 0, %s71
    %s88 = sphi 0, %s72
    %s96 = sphi 0, %s98
    %s99 = sphi 0, %s96
    %s100 = sphi 0, %s99
    %s116 = sphi 0, %s100
    %s124 = sphi 0, %s126
    %s127 = sphi 0, %s124
    %s128 = sphi 0, %s127
    %s144 = sphi 0, %s128
  $region4: #{tpu_custom_call.1} parent=0 // loop_header_branch
    %12 = sbr.rel (%p10) target = $region8
  $region5: #{tpu_custom_call.1} parent=0 // loop_body
    %s14 = ssub.s32 %s9, 1
    %s15 = ssub.s32 %s9, 2
    %s25 = sadd.s32 1, %s18
    %p26 = scmp.ge.s32.totalorder %s25, 1
    %s27 = scalar_select %p26, 0, %s25
    %s28 = sadd.s32 1, %s17
    %s29 = scalar_select %p26, %s28, %s17
    %p30 = scmp.ge.s32.totalorder %s29, 1
    %s31 = scalar_select %p30, 0, %s29
    %s32 = sadd.s32 1, %s16
    %s33 = scalar_select %p30, %s32, %s16
    %p34 = scmp.ge.s32.totalorder %s33, 2
    %s35 = scalar_select %p34, 0, %s33
    %s36 = ssub.s32 %s16, %s35
    %s37 = ssub.s32 %s17, %s31
    %s38 = sor.u32 %s36, %s37
    %p39 = scmp.eq.s32.totalorder %s38, 0
    %s41 = sadd.s32 %s40, 1
    %s42 = scalar_select %p39, %s40, %s41
    %p45 = pneg %p39
    %p46 = scmp.eq.s32.totalorder %s9, 1
    %p47 = por %p45, %p46
    %p48 = scmp.ne.s32.totalorder %s40, %s43
    %p49 = scmp.eq.s32.totalorder %s9, 0
    %p50 = por %p48, %p49
    %p51 = scmp.ne.s32.totalorder %s40, %s43
    %p52 = scmp.eq.s32.totalorder %s14, 1
    %p53 = por %p51, %p52
    %p54 = scmp.ne.s32.totalorder %s43, %s44
    %p55 = scmp.eq.s32.totalorder %s14, 0
    %p56 = por %p54, %p55
    %p57 = scmp.ne.s32.totalorder %s43, %s44
    %p58 = scmp.eq.s32.totalorder %s15, 1
    %p59 = por %p57, %p58
    %p61 = scmp.ne.s32.totalorder %s44, %s60
    %p62 = scmp.eq.s32.totalorder %s15, 0
    %p63 = por %p61, %p62
    %s64 = ssub.s32 %s16, %s35
    %s65 = ssub.s32 %s18, %s27
    %s66 = sor.u32 %s64, %s65
    %p67 = scmp.eq.s32.totalorder %s66, 0
    %s69 = sadd.s32 %s68, 1
    %s70 = scalar_select %p67, %s68, %s69
    %p73 = pneg %p67
    %p74 = scmp.eq.s32.totalorder %s9, 1
    %p75 = por %p73, %p74
    %p76 = scmp.ne.s32.totalorder %s68, %s71
    %p77 = scmp.eq.s32.totalorder %s9, 0
    %p78 = por %p76, %p77
    %p79 = scmp.ne.s32.totalorder %s68, %s71
    %p80 = scmp.eq.s32.totalorder %s14, 1
    %p81 = por %p79, %p80
    %p82 = scmp.ne.s32.totalorder %s71, %s72
    %p83 = scmp.eq.s32.totalorder %s14, 0
    %p84 = por %p82, %p83
    %p85 = scmp.ne.s32.totalorder %s71, %s72
    %p86 = scmp.eq.s32.totalorder %s15, 1
    %p87 = por %p85, %p86
    %p89 = scmp.ne.s32.totalorder %s72, %s88
    %p90 = scmp.eq.s32.totalorder %s15, 0
    %p91 = por %p89, %p90
    %s92 = ssub.s32 %s16, %s35
    %s93 = ssub.s32 %s18, %s27
    %s94 = sor.u32 %s92, %s93
    %p95 = scmp.eq.s32.totalorder %s94, 0
    %s97 = sadd.s32 %s96, 1
    %s98 = scalar_select %p95, %s96, %s97
    %p101 = pneg %p95
    %p102 = scmp.eq.s32.totalorder %s9, 1
    %p103 = por %p101, %p102
    %p104 = scmp.ne.s32.totalorder %s96, %s99
    %p105 = scmp.eq.s32.totalorder %s9, 0
    %p106 = por %p104, %p105
    %p107 = scmp.ne.s32.totalorder %s96, %s99
    %p108 = scmp.eq.s32.totalorder %s14, 1
    %p109 = por %p107, %p108
    %p110 = scmp.ne.s32.totalorder %s99, %s100
    %p111 = scmp.eq.s32.totalorder %s14, 0
    %p112 = por %p110, %p111
    %p113 = scmp.ne.s32.totalorder %s99, %s100
    %p114 = scmp.eq.s32.totalorder %s15, 1
    %p115 = por %p113, %p114
    %p117 = scmp.ne.s32.totalorder %s100, %s116
    %p118 = scmp.eq.s32.totalorder %s15, 0
    %p119 = por %p117, %p118
    %s120 = ssub.s32 %s16, %s35
    %s121 = ssub.s32 %s17, %s31
    %s122 = sor.u32 %s120, %s121
    %p123 = scmp.eq.s32.totalorder %s122, 0
    %s125 = sadd.s32 %s124, 1
    %s126 = scalar_select %p123, %s124, %s125
    %p129 = pneg %p123
    %p130 = scmp.eq.s32.totalorder %s9, 1
    %p131 = por %p129, %p130
    %p132 = scmp.ne.s32.totalorder %s124, %s127
    %p133 = scmp.eq.s32.totalorder %s9, 0
    %p134 = por %p132, %p133
    %p135 = scmp.ne.s32.totalorder %s124, %s127
    %p136 = scmp.eq.s32.totalorder %s14, 1
    %p137 = por %p135, %p136
    %p138 = scmp.ne.s32.totalorder %s127, %s128
    %p139 = scmp.eq.s32.totalorder %s14, 0
    %p140 = por %p138, %p139
    %p141 = scmp.ne.s32.totalorder %s127, %s128
    %p142 = scmp.eq.s32.totalorder %s15, 1
    %p143 = por %p141, %p142
    %p145 = scmp.ne.s32.totalorder %s128, %s144
    %p146 = scmp.eq.s32.totalorder %s15, 0
    %p147 = por %p145, %p146
    %p148 = scmp.le.s32.totalorder 1, %s9
    %p149 = scmp.lt.s32.totalorder %s9, 3
    %p150 = pnand %p148, %p149
    %p151 = pneg %p150
    // Predicated region
    $region9: #{tpu_custom_call.1} parent=5 // pred_check
      _
    $region10: #{tpu_custom_call.1} parent=5 // pred_check_branch
      %153 = sbr.rel (%p150) target = $region12
    $region11: #{tpu_custom_call.1} parent=5 // pred_region
      %s154 = ssub.s32 %s9, 1
    $region12: #{tpu_custom_call.1} parent=5 // pred_fallthru
      _
    %p155 = scmp.lt.s32.totalorder %s9, 2
    // Predicated region
    $region13: #{tpu_custom_call.1} parent=5 // pred_check
      %p156 = pneg %p155
    $region14: #{tpu_custom_call.1} parent=5 // pred_check_branch
      %158 = sbr.rel (%p156) target = $region16
    $region15: #{tpu_custom_call.1} parent=5 // pred_region
      // Predicated region
      $region17: #{tpu_custom_call.1} parent=15 // pred_check
        %p159 = pneg %p50
      $region18: #{tpu_custom_call.1} parent=15 // pred_check_branch
        %161 = sbr.rel (%p159) target = $region20
      $region19: #{tpu_custom_call.1} parent=15 // pred_region
        %s162 = smul.u32 2, %s17
        %p163 = scmp.lt.s32.totalorder %s16, 1
        %s164 = scalar_select %p163, %s16, 1
        %p165 = scmp.lt.s32.totalorder %s162, 1
        %s166 = scalar_select %p165, %s162, 1
        %s167 = smul.addr %s164, 8
        %s168 = sadd.s32 %s166, %s167
        %s169 = smul.addr %s168, 4
        %s170 = scalar_lea.vmem %s0, %s169
        %s171 = smul.u32 2, %s17
      $region20: #{tpu_custom_call.1} parent=15 // pred_fallthru
        _
      // Predicated region
      $region21: #{tpu_custom_call.1} parent=15 // pred_check
        %p172 = pneg %p78
      $region22: #{tpu_custom_call.1} parent=15 // pred_check_branch
        %174 = sbr.rel (%p172) target = $region24
      $region23: #{tpu_custom_call.1} parent=15 // pred_region
        %p175 = scmp.lt.s32.totalorder %s16, 1
        %s176 = scalar_select %p175, %s16, 1
        %p177 = scmp.lt.s32.totalorder %s18, 0
        %s178 = scalar_select %p177, %s18, 0
        %s179 = smul.addr %s176, 4
        %s180 = sadd.s32 %s178, %s179
        %s181 = smul.addr %s180, 4
        %s182 = scalar_lea.vmem %s1, %s181
      $region24: #{tpu_custom_call.1} parent=15 // pred_fallthru
        _
      // Predicated region
      $region25: #{tpu_custom_call.1} parent=15 // pred_check
        %p183 = pneg %p106
      $region26: #{tpu_custom_call.1} parent=15 // pred_check_branch
        %185 = sbr.rel (%p183) target = $region28
      $region27: #{tpu_custom_call.1} parent=15 // pred_region
        %s186 = smul.u32 16, %s18
        %p187 = scmp.lt.s32.totalorder %s16, 1
        %s188 = scalar_select %p187, %s16, 1
        %p189 = scmp.lt.s32.totalorder %s186, 15
        %s190 = scalar_select %p189, %s186, 15
        %s191 = smul.addr %s188, 64
        %s192 = sadd.s32 %s190, %s191
        %s193 = smul.addr %s192, 4
        %s194 = scalar_lea.vmem %s2, %s193
        %s195 = smul.u32 16, %s18
      $region28: #{tpu_custom_call.1} parent=15 // pred_fallthru
        _
    $region16: #{tpu_custom_call.1} parent=5 // pred_fallthru
      _
    %p196 = scmp.le.s32.totalorder 1, %s9
    %p197 = scmp.lt.s32.totalorder %s9, 3
    %p198 = pnand %p196, %p197
    %p199 = pneg %p198
    // Predicated region
    $region29: #{tpu_custom_call.1} parent=5 // pred_check
      _
    $region30: #{tpu_custom_call.1} parent=5 // pred_check_branch
      %201 = sbr.rel (%p198) target = $region32
    $region31: #{tpu_custom_call.1} parent=5 // pred_region
      %s202 = ssub.s32 %s9, 1
      %s203 = smul.u32 2, %s20
      %p204 = scmp.lt.s32.totalorder %s19, 1
      %s205 = scalar_select %p204, %s19, 1
      %p206 = scmp.lt.s32.totalorder %s203, 1
      %s207 = scalar_select %p206, %s203, 1
      %s208 = smul.addr %s205, 8
      %s209 = sadd.s32 %s207, %s208
      %s210 = smul.addr %s209, 4
      %s211 = scalar_lea.vmem %s0, %s210
      %p212 = pneg %p56
      %p213 = pneg %p53
      %p214 = scmp.lt.s32.totalorder %s19, 1
      %s215 = scalar_select %p214, %s19, 1
      %p216 = scmp.lt.s32.totalorder %s21, 0
      %s217 = scalar_select %p216, %s21, 0
      %s218 = smul.addr %s215, 4
      %s219 = sadd.s32 %s217, %s218
      %s220 = smul.addr %s219, 4
      %s221 = scalar_lea.vmem %s1, %s220
      %p222 = pneg %p84
      %p223 = pneg %p81
      %s224 = smul.u32 16, %s21
      %p225 = scmp.lt.s32.totalorder %s19, 1
      %s226 = scalar_select %p225, %s19, 1
      %p227 = scmp.lt.s32.totalorder %s224, 15
      %s228 = scalar_select %p227, %s224, 15
      %s229 = smul.addr %s226, 64
      %s230 = sadd.s32 %s228, %s229
      %s231 = smul.addr %s230, 4
      %s232 = scalar_lea.vmem %s2, %s231
      %p233 = pneg %p112
      %p234 = pneg %p109
      %p235 = pneg %p140
      %p236 = pneg %p137
      %s237 = smul.u32 2, %s20
      %p238 = scmp.lt.s32.totalorder %s19, 1
      %s239 = scalar_select %p238, %s19, 1
      %p240 = scmp.lt.s32.totalorder %s237, 1
      %s241 = scalar_select %p240, %s237, 1
      %s242 = smul.addr %s239, 8
      %s243 = sadd.s32 %s241, %s242
      %s244 = smul.addr %s243, 8
      %s245 = scalar_lea.vmem %s3, %s244
      %s246 = smul.u32 2, %s20
      %p247 = scmp.lt.s32.totalorder %s19, 1
      %s248 = scalar_select %p247, %s19, 1
      %p249 = scmp.lt.s32.totalorder %s246, 1
      %s250 = scalar_select %p249, %s246, 1
      %s251 = smul.addr %s248, 8
      %s252 = sadd.s32 %s250, %s251
      %s253 = smul.addr %s252, 4
      %s254 = scalar_lea.vmem %s0, %s253
      %s255 = smul.u32 2, %s20
      %p256 = scmp.lt.s32.totalorder %s19, 1
      %s257 = scalar_select %p256, %s19, 1
      %p258 = scmp.lt.s32.totalorder %s21, 0
      %s259 = scalar_select %p258, %s21, 0
      %s260 = smul.addr %s257, 4
      %s261 = sadd.s32 %s259, %s260
      %s262 = smul.addr %s261, 4
      %s263 = scalar_lea.vmem %s1, %s262
      %s264 = smul.u32 16, %s21
      %p265 = scmp.lt.s32.totalorder %s19, 1
      %s266 = scalar_select %p265, %s19, 1
      %p267 = scmp.lt.s32.totalorder %s264, 15
      %s268 = scalar_select %p267, %s264, 15
      %s269 = smul.addr %s266, 64
      %s270 = sadd.s32 %s268, %s269
      %s271 = smul.addr %s270, 4
      %s272 = scalar_lea.vmem %s2, %s271
      %s273 = smul.u32 16, %s21
      %s274 = smul.u32 2, %s20
      %p275 = scmp.lt.s32.totalorder %s19, 1
      %s276 = scalar_select %p275, %s19, 1
      %p277 = scmp.lt.s32.totalorder %s274, 1
      %s278 = scalar_select %p277, %s274, 1
      %s279 = smul.addr %s276, 8
      %s280 = sadd.s32 %s278, %s279
      %s281 = smul.addr %s280, 8
      %s282 = scalar_lea.vmem %s3, %s281
      %s283 = smul.u32 2, %s20
      %p286 = scmp.eq.s32.totalorder %s21, 0
      // Predicated region
      $region33: #{tpu_custom_call.1} parent=31 // pred_check
        %p287 = pneg %p286
      $region34: #{tpu_custom_call.1} parent=31 // pred_check_branch
        %289 = sbr.rel (%p287) target = $region36
      $region35: #{tpu_custom_call.1} parent=31 // pred_region
        %vm290 = vcmask 7168
        %291 = vst.msk [vmem:[#allocation2] sm:$0xff] %vm290, -inf
        %292 = vst.msk [vmem:[#allocation2 + $0x8] sm:$0xff] %vm290, -inf
        %293 = vst.msk [vmem:[#allocation2 + $0x10] sm:$0xff] %vm290, -inf
        %294 = vst.msk [vmem:[#allocation2 + $0x18] sm:$0xff] %vm290, -inf
        %295 = vst.msk [vmem:[#allocation2 + $0x20] sm:$0xff] %vm290, -inf
        %296 = vst.msk [vmem:[#allocation2 + $0x28] sm:$0xff] %vm290, -inf
        %297 = vst.msk [vmem:[#allocation2 + $0x30] sm:$0xff] %vm290, -inf
        %298 = vst.msk [vmem:[#allocation2 + $0x38] sm:$0xff] %vm290, -inf
        %299 = vst.msk [vmem:[#allocation3] sm:$0xff] %vm290, 0.0
        %300 = vst.msk [vmem:[#allocation3 + $0x8] sm:$0xff] %vm290, 0.0
        %301 = vst.msk [vmem:[#allocation3 + $0x10] sm:$0xff] %vm290, 0.0
        %302 = vst.msk [vmem:[#allocation3 + $0x18] sm:$0xff] %vm290, 0.0
        %303 = vst.msk [vmem:[#allocation3 + $0x20] sm:$0xff] %vm290, 0.0
        %304 = vst.msk [vmem:[#allocation3 + $0x28] sm:$0xff] %vm290, 0.0
        %305 = vst.msk [vmem:[#allocation3 + $0x30] sm:$0xff] %vm290, 0.0
        %306 = vst.msk [vmem:[#allocation3 + $0x38] sm:$0xff] %vm290, 0.0
        %vm307 = vcmask 64512
        %308 = vst.msk [vmem:[#allocation4] sm:$0xff] %vm307, 0.0
        %309 = vst.msk [vmem:[#allocation4 + $0x8] sm:$0xff] %vm307, 0.0
        %310 = vst.msk [vmem:[#allocation4 + $0x10] sm:$0xff] %vm307, 0.0
        %311 = vst.msk [vmem:[#allocation4 + $0x18] sm:$0xff] %vm307, 0.0
        %312 = vst.msk [vmem:[#allocation4 + $0x20] sm:$0xff] %vm307, 0.0
        %313 = vst.msk [vmem:[#allocation4 + $0x28] sm:$0xff] %vm307, 0.0
        %314 = vst.msk [vmem:[#allocation4 + $0x30] sm:$0xff] %vm307, 0.0
        %315 = vst.msk [vmem:[#allocation4 + $0x38] sm:$0xff] %vm307, 0.0
      $region36: #{tpu_custom_call.1} parent=31 // pred_fallthru
        _
      %v316 = vld [vmem:[%s254] sm:$0xf]
      %v317 = vld [vmem:[%s254 + $0x4] sm:$0xf]
      %v318 = vld [vmem:[%s254 + $0x8] sm:$0xf]
      %v319 = vld [vmem:[%s254 + $0xc] sm:$0xf]
      %v320 = vld [vmem:[%s254 + $0x10] sm:$0xf]
      %v321 = vld [vmem:[%s254 + $0x14] sm:$0xf]
      %v322 = vld [vmem:[%s254 + $0x18] sm:$0xf]
      %v323 = vld [vmem:[%s254 + $0x1c] sm:$0xf]
      %v324 = vld [vmem:[%s263] sm:$0xf]
      %v325 = vld [vmem:[%s263 + $0x4] sm:$0xf]
      %v326 = vld [vmem:[%s263 + $0x8] sm:$0xf]
      %v327 = vld [vmem:[%s263 + $0xc] sm:$0xf]
      %v328 = vld [vmem:[%s272] sm:$0xf]
      %v329 = vld [vmem:[%s272 + $0x4] sm:$0xf]
      %v330 = vld [vmem:[%s272 + $0x8] sm:$0xf]
      %v331 = vld [vmem:[%s272 + $0xc] sm:$0xf]
      %v332 = vld [vmem:[%s272 + $0x10] sm:$0xf]
      %v333 = vld [vmem:[%s272 + $0x14] sm:$0xf]
      %v334 = vld [vmem:[%s272 + $0x18] sm:$0xf]
      %v335 = vld [vmem:[%s272 + $0x1c] sm:$0xf]
      %v336 = vld [vmem:[%s272 + $0x20] sm:$0xf]
      %v337 = vld [vmem:[%s272 + $0x24] sm:$0xf]
      %v338 = vld [vmem:[%s272 + $0x28] sm:$0xf]
      %v339 = vld [vmem:[%s272 + $0x2c] sm:$0xf]
      %v340 = vld [vmem:[%s272 + $0x30] sm:$0xf]
      %v341 = vld [vmem:[%s272 + $0x34] sm:$0xf]
      %v342 = vld [vmem:[%s272 + $0x38] sm:$0xf]
      %v343 = vld [vmem:[%s272 + $0x3c] sm:$0xf]
      %v344 = vld [vmem:[%s272 + $0x40] sm:$0xf]
      %v345 = vld [vmem:[%s272 + $0x44] sm:$0xf]
      %v346 = vld [vmem:[%s272 + $0x48] sm:$0xf]
      %v347 = vld [vmem:[%s272 + $0x4c] sm:$0xf]
      %v348 = vld [vmem:[%s272 + $0x50] sm:$0xf]
      %v349 = vld [vmem:[%s272 + $0x54] sm:$0xf]
      %v350 = vld [vmem:[%s272 + $0x58] sm:$0xf]
      %v351 = vld [vmem:[%s272 + $0x5c] sm:$0xf]
      %v352 = vld [vmem:[%s272 + $0x60] sm:$0xf]
      %v353 = vld [vmem:[%s272 + $0x64] sm:$0xf]
      %v354 = vld [vmem:[%s272 + $0x68] sm:$0xf]
      %v355 = vld [vmem:[%s272 + $0x6c] sm:$0xf]
      %v356 = vld [vmem:[%s272 + $0x70] sm:$0xf]
      %v357 = vld [vmem:[%s272 + $0x74] sm:$0xf]
      %v358 = vld [vmem:[%s272 + $0x78] sm:$0xf]
      %v359 = vld [vmem:[%s272 + $0x7c] sm:$0xf]
      %v360 = vld [vmem:[%s272 + $0x80] sm:$0xf]
      %v361 = vld [vmem:[%s272 + $0x84] sm:$0xf]
      %v362 = vld [vmem:[%s272 + $0x88] sm:$0xf]
      %v363 = vld [vmem:[%s272 + $0x8c] sm:$0xf]
      %v364 = vld [vmem:[%s272 + $0x90] sm:$0xf]
      %v365 = vld [vmem:[%s272 + $0x94] sm:$0xf]
      %v366 = vld [vmem:[%s272 + $0x98] sm:$0xf]
      %v367 = vld [vmem:[%s272 + $0x9c] sm:$0xf]
      %v368 = vld [vmem:[%s272 + $0xa0] sm:$0xf]
      %v369 = vld [vmem:[%s272 + $0xa4] sm:$0xf]
      %v370 = vld [vmem:[%s272 + $0xa8] sm:$0xf]
      %v371 = vld [vmem:[%s272 + $0xac] sm:$0xf]
      %v372 = vld [vmem:[%s272 + $0xb0] sm:$0xf]
      %v373 = vld [vmem:[%s272 + $0xb4] sm:$0xf]
      %v374 = vld [vmem:[%s272 + $0xb8] sm:$0xf]
      %v375 = vld [vmem:[%s272 + $0xbc] sm:$0xf]
      %v376 = vld [vmem:[%s272 + $0xc0] sm:$0xf]
      %v377 = vld [vmem:[%s272 + $0xc4] sm:$0xf]
      %v378 = vld [vmem:[%s272 + $0xc8] sm:$0xf]
      %v379 = vld [vmem:[%s272 + $0xcc] sm:$0xf]
      %v380 = vld [vmem:[%s272 + $0xd0] sm:$0xf]
      %v381 = vld [vmem:[%s272 + $0xd4] sm:$0xf]
      %v382 = vld [vmem:[%s272 + $0xd8] sm:$0xf]
      %v383 = vld [vmem:[%s272 + $0xdc] sm:$0xf]
      %v384 = vld [vmem:[%s272 + $0xe0] sm:$0xf]
      %v385 = vld [vmem:[%s272 + $0xe4] sm:$0xf]
      %v386 = vld [vmem:[%s272 + $0xe8] sm:$0xf]
      %v387 = vld [vmem:[%s272 + $0xec] sm:$0xf]
      %v388 = vld [vmem:[%s272 + $0xf0] sm:$0xf]
      %v389 = vld [vmem:[%s272 + $0xf4] sm:$0xf]
      %v390 = vld [vmem:[%s272 + $0xf8] sm:$0xf]
      %v391 = vld [vmem:[%s272 + $0xfc] sm:$0xf]
      %v392 = vmul.bf16 %v316, 1052065461
      %v393 = vmul.bf16 %v317, 1052065461
      %v394 = vmul.bf16 %v318, 1052065461
      %v395 = vmul.bf16 %v319, 1052065461
      %v396 = vmul.bf16 %v320, 1052065461
      %v397 = vmul.bf16 %v321, 1052065461
      %v398 = vmul.bf16 %v322, 1052065461
      %v399 = vmul.bf16 %v323, 1052065461
      %v402 = vunpack.c.l.b16 %v392
      %v403 = vunpack.c.l.b16 %v393
      %v404 = vpack.c.b16 %v403, %v402
      %vm405 = vcmask 64512
      %v407 = vsel %vm405, %v404, 0
      %vm409 = vcmask 1043456
      %v411 = vsel %vm409, %v324, 0
      %413 = vmatprep.subr.bf16.mxu0 0
      %414 = vmatpush1.bf16.msra.mxu0 %v411
      %415 = vmatprep.subr.bf16.mxu0 0
      %416 = vmatpush1.bf16.msra.mxu0 0
      %417 = vmatprep.subr.bf16.mxu0 0
      %418 = vmatpush1.bf16.msra.mxu0 0
      %419 = vmatprep.subr.bf16.mxu0 0
      %420 = vmatpush1.bf16.msra.mxu0 0
      %421 = vmatprep.subr.bf16.mxu0 0
      %422 = vmatpush1.bf16.msra.mxu0 0
      %423 = vmatprep.subr.bf16.mxu0 0
      %424 = vmatpush1.bf16.msra.mxu0 0
      %425 = vmatprep.subr.bf16.mxu0 0
      %426 = vmatpush1.bf16.msra.mxu0 0
      %427 = vmatprep.subr.bf16.mxu0 0
      %428 = vmatpush1.bf16.msra.mxu0 0
      %429 = vmatprep.subr.bf16.mxu0 0
      %430 = vmatpush1.bf16.msra.mxu0 0
      %431 = vmatprep.subr.bf16.mxu0 0
      %432 = vmatpush1.bf16.msra.mxu0 0
      %433 = vmatprep.subr.bf16.mxu0 0
      %434 = vmatpush1.bf16.msra.mxu0 0
      %435 = vmatprep.subr.bf16.mxu0 0
      %436 = vmatpush1.bf16.msra.mxu0 0
      %437 = vmatprep.subr.bf16.mxu0 0
      %438 = vmatpush1.bf16.msra.mxu0 0
      %439 = vmatprep.subr.bf16.mxu0 0
      %440 = vmatpush1.bf16.msra.mxu0 0
      %441 = vmatprep.subr.bf16.mxu0 0
      %442 = vmatpush1.bf16.msra.mxu0 0
      %443 = vmatprep.subr.bf16.mxu0 0
      %444 = vmatpush1.bf16.msra.mxu0 0
      %445 = vmatprep.mubr.bf16.mxu0 0
      %446 = vmatmul.mubr.bf16.gmra.mrb[0].mxu0 %v407
      %v447 = vpop.f32.mrb[0].mxu0
      %v448 = vadd.f32 0.0, %v447
      %v449 = vpop.f32.mrb[0].mxu0
      %v450 = vpop.f32.mrb[0].mxu0
      %v451 = vadd.f32 0.0, %v450
      %v452 = vpop.f32.mrb[0].mxu0
      %453 = vdwg.mxu0
      %v456 = vunpack.c.l.b16 %v394
      %v457 = vunpack.c.l.b16 %v395
      %v458 = vpack.c.b16 %v457, %v456
      %v460 = vsel %vm405, %v458, 0
      %v463 = vsel %vm409, %v325, 0
      %465 = vmatprep.subr.bf16.mxu0 0
      %466 = vmatpush1.bf16.msra.mxu0 %v463
      %467 = vmatprep.subr.bf16.mxu0 0
      %468 = vmatpush1.bf16.msra.mxu0 0
      %469 = vmatprep.subr.bf16.mxu0 0
      %470 = vmatpush1.bf16.msra.mxu0 0
      %471 = vmatprep.subr.bf16.mxu0 0
      %472 = vmatpush1.bf16.msra.mxu0 0
      %473 = vmatprep.subr.bf16.mxu0 0
      %474 = vmatpush1.bf16.msra.mxu0 0
      %475 = vmatprep.subr.bf16.mxu0 0
      %476 = vmatpush1.bf16.msra.mxu0 0
      %477 = vmatprep.subr.bf16.mxu0 0
      %478 = vmatpush1.bf16.msra.mxu0 0
      %479 = vmatprep.subr.bf16.mxu0 0
      %480 = vmatpush1.bf16.msra.mxu0 0
      %481 = vmatprep.subr.bf16.mxu0 0
      %482 = vmatpush1.bf16.msra.mxu0 0
      %483 = vmatprep.subr.bf16.mxu0 0
      %484 = vmatpush1.bf16.msra.mxu0 0
      %485 = vmatprep.subr.bf16.mxu0 0
      %486 = vmatpush1.bf16.msra.mxu0 0
      %487 = vmatprep.subr.bf16.mxu0 0
      %488 = vmatpush1.bf16.msra.mxu0 0
      %489 = vmatprep.subr.bf16.mxu0 0
      %490 = vmatpush1.bf16.msra.mxu0 0
      %491 = vmatprep.subr.bf16.mxu0 0
      %492 = vmatpush1.bf16.msra.mxu0 0
      %493 = vmatprep.subr.bf16.mxu0 0
      %494 = vmatpush1.bf16.msra.mxu0 0
      %495 = vmatprep.subr.bf16.mxu0 0
      %496 = vmatpush1.bf16.msra.mxu0 0
      %497 = vmatprep.mubr.bf16.mxu0 0
      %498 = vmatmul.mubr.bf16.gmra.mrb[0].mxu0 %v460
      %v499 = vpop.f32.mrb[0].mxu0
      %v500 = vadd.f32 0.0, %v499
      %v501 = vpop.f32.mrb[0].mxu0
      %v502 = vpop.f32.mrb[0].mxu0
      %v503 = vadd.f32 0.0, %v502
      %v504 = vpop.f32.mrb[0].mxu0
      %505 = vdwg.mxu0
      %v508 = vunpack.c.l.b16 %v396
      %v509 = vunpack.c.l.b16 %v397
      %v510 = vpack.c.b16 %v509, %v508
      %v512 = vsel %vm405, %v510, 0
      %v515 = vsel %vm409, %v326, 0
      %517 = vmatprep.subr.bf16.mxu0 0
      %518 = vmatpush1.bf16.msra.mxu0 %v515
      %519 = vmatprep.subr.bf16.mxu0 0
      %520 = vmatpush1.bf16.msra.mxu0 0
      %521 = vmatprep.subr.bf16.mxu0 0
      %522 = vmatpush1.bf16.msra.mxu0 0
      %523 = vmatprep.subr.bf16.mxu0 0
      %524 = vmatpush1.bf16.msra.mxu0 0
      %525 = vmatprep.subr.bf16.mxu0 0
      %526 = vmatpush1.bf16.msra.mxu0 0
      %527 = vmatprep.subr.bf16.mxu0 0
      %528 = vmatpush1.bf16.msra.mxu0 0
      %529 = vmatprep.subr.bf16.mxu0 0
      %530 = vmatpush1.bf16.msra.mxu0 0
      %531 = vmatprep.subr.bf16.mxu0 0
      %532 = vmatpush1.bf16.msra.mxu0 0
      %533 = vmatprep.subr.bf16.mxu0 0
      %534 = vmatpush1.bf16.msra.mxu0 0
      %535 = vmatprep.subr.bf16.mxu0 0
      %536 = vmatpush1.bf16.msra.mxu0 0
      %537 = vmatprep.subr.bf16.mxu0 0
      %538 = vmatpush1.bf16.msra.mxu0 0
      %539 = vmatprep.subr.bf16.mxu0 0
      %540 = vmatpush1.bf16.msra.mxu0 0
      %541 = vmatprep.subr.bf16.mxu0 0
      %542 = vmatpush1.bf16.msra.mxu0 0
      %543 = vmatprep.subr.bf16.mxu0 0
      %544 = vmatpush1.bf16.msra.mxu0 0
      %545 = vmatprep.subr.bf16.mxu0 0
      %546 = vmatpush1.bf16.msra.mxu0 0
      %547 = vmatprep.subr.bf16.mxu0 0
      %548 = vmatpush1.bf16.msra.mxu0 0
      %549 = vmatprep.mubr.bf16.mxu0 0
      %550 = vmatmul.mubr.bf16.gmra.mrb[0].mxu0 %v512
      %v551 = vpop.f32.mrb[0].mxu0
      %v552 = vadd.f32 0.0, %v551
      %v553 = vpop.f32.mrb[0].mxu0
      %v554 = vpop.f32.mrb[0].mxu0
      %v555 = vadd.f32 0.0, %v554
      %v556 = vpop.f32.mrb[0].mxu0
      %557 = vdwg.mxu0
      %v560 = vunpack.c.l.b16 %v398
      %v561 = vunpack.c.l.b16 %v399
      %v562 = vpack.c.b16 %v561, %v560
      %v564 = vsel %vm405, %v562, 0
      %v567 = vsel %vm409, %v327, 0
      %569 = vmatprep.subr.bf16.mxu0 0
      %570 = vmatpush1.bf16.msra.mxu0 %v567
      %571 = vmatprep.subr.bf16.mxu0 0
      %572 = vmatpush1.bf16.msra.mxu0 0
      %573 = vmatprep.subr.bf16.mxu0 0
      %574 = vmatpush1.bf16.msra.mxu0 0
      %575 = vmatprep.subr.bf16.mxu0 0
      %576 = vmatpush1.bf16.msra.mxu0 0
      %577 = vmatprep.subr.bf16.mxu0 0
      %578 = vmatpush1.bf16.msra.mxu0 0
      %579 = vmatprep.subr.bf16.mxu0 0
      %580 = vmatpush1.bf16.msra.mxu0 0
      %581 = vmatprep.subr.bf16.mxu0 0
      %582 = vmatpush1.bf16.msra.mxu0 0
      %583 = vmatprep.subr.bf16.mxu0 0
      %584 = vmatpush1.bf16.msra.mxu0 0
      %585 = vmatprep.subr.bf16.mxu0 0
      %586 = vmatpush1.bf16.msra.mxu0 0
      %587 = vmatprep.subr.bf16.mxu0 0
      %588 = vmatpush1.bf16.msra.mxu0 0
      %589 = vmatprep.subr.bf16.mxu0 0
      %590 = vmatpush1.bf16.msra.mxu0 0
      %591 = vmatprep.subr.bf16.mxu0 0
      %592 = vmatpush1.bf16.msra.mxu0 0
      %593 = vmatprep.subr.bf16.mxu0 0
      %594 = vmatpush1.bf16.msra.mxu0 0
      %595 = vmatprep.subr.bf16.mxu0 0
      %596 = vmatpush1.bf16.msra.mxu0 0
      %597 = vmatprep.subr.bf16.mxu0 0
      %598 = vmatpush1.bf16.msra.mxu0 0
      %599 = vmatprep.subr.bf16.mxu0 0
      %600 = vmatpush1.bf16.msra.mxu0 0
      %601 = vmatprep.mubr.bf16.mxu0 0
      %602 = vmatmul.mubr.bf16.gmra.mrb[0].mxu0 %v564
      %v603 = vpop.f32.mrb[0].mxu0
      %v604 = vadd.f32 0.0, %v603
      %v605 = vpop.f32.mrb[0].mxu0
      %v606 = vpop.f32.mrb[0].mxu0
      %v607 = vadd.f32 0.0, %v606
      %v608 = vpop.f32.mrb[0].mxu0
      %609 = vdwg.mxu0
      %s610 = smul.u32 %s21, 128
      %v611 = vlaneseq
      %v612 = vand.u32 %v611, 127
      %v613 = vstv %s610
      %v614 = vadd.s32 %v613, %v612
      %vm615 = vcmp.lt.s32.totalorder %v614, 8
      %v616 = vsel %vm615, %v448, -2.3819763e+38
      %v617 = vsel %vm615, %v451, -2.3819763e+38
      %v618 = vsel %vm615, %v500, -2.3819763e+38
      %v619 = vsel %vm615, %v503, -2.3819763e+38
      %v620 = vsel %vm615, %v552, -2.3819763e+38
      %v621 = vsel %vm615, %v555, -2.3819763e+38
      %v622 = vsel %vm615, %v604, -2.3819763e+38
      %v623 = vsel %vm615, %v607, -2.3819763e+38
      %v624 = vld [vmem:[#allocation2] sm:$0xff]
      %v625 = vld [vmem:[#allocation2 + $0x8] sm:$0xff]
      %v626 = vld [vmem:[#allocation2 + $0x10] sm:$0xff]
      %v627 = vld [vmem:[#allocation2 + $0x18] sm:$0xff]
      %v628 = vld [vmem:[#allocation2 + $0x20] sm:$0xff]
      %v629 = vld [vmem:[#allocation2 + $0x28] sm:$0xff]
      %v630 = vld [vmem:[#allocation2 + $0x30] sm:$0xff]
      %v631 = vld [vmem:[#allocation2 + $0x38] sm:$0xff]
      %632 = vmax.xlane.f32.xlu0 %v616
      %v633 = vpop.xlane.xlu0 %632
      %634 = vmax.xlane.f32.xlu0 %v617
      %v635 = vpop.xlane.xlu0 %634
      %636 = vmax.xlane.f32.xlu0 %v618
      %v637 = vpop.xlane.xlu0 %636
      %638 = vmax.xlane.f32.xlu0 %v619
      %v639 = vpop.xlane.xlu0 %638
      %640 = vmax.xlane.f32.xlu0 %v620
      %v641 = vpop.xlane.xlu0 %640
      %642 = vmax.xlane.f32.xlu0 %v621
      %v643 = vpop.xlane.xlu0 %642
      %644 = vmax.xlane.f32.xlu0 %v622
      %v645 = vpop.xlane.xlu0 %644
      %646 = vmax.xlane.f32.xlu0 %v623
      %v647 = vpop.xlane.xlu0 %646
      %v648 = vmax.f32 %v624, %v633
      %v649 = vmax.f32 %v625, %v635
      %v650 = vmax.f32 %v626, %v637
      %v651 = vmax.f32 %v627, %v639
      %v652 = vmax.f32 %v628, %v641
      %v653 = vmax.f32 %v629, %v643
      %v654 = vmax.f32 %v630, %v645
      %v655 = vmax.f32 %v631, %v647
      %v656 = vsub.f32 %v624, %v648
      %v657 = vsub.f32 %v625, %v649
      %v658 = vsub.f32 %v626, %v650
      %v659 = vsub.f32 %v627, %v651
      %v660 = vsub.f32 %v628, %v652
      %v661 = vsub.f32 %v629, %v653
      %v662 = vsub.f32 %v630, %v654
      %v663 = vsub.f32 %v631, %v655
      %v664 = vmul.f32 %v656, 1.442695
      %v665 = vpow.pop %v664
      %v666 = vmul.f32 %v657, 1.442695
      %v667 = vpow.pop %v666
      %v668 = vmul.f32 %v658, 1.442695
      %v669 = vpow.pop %v668
      %v670 = vmul.f32 %v659, 1.442695
      %v671 = vpow.pop %v670
      %v672 = vmul.f32 %v660, 1.442695
      %v673 = vpow.pop %v672
      %v674 = vmul.f32 %v661, 1.442695
      %v675 = vpow.pop %v674
      %v676 = vmul.f32 %v662, 1.442695
      %v677 = vpow.pop %v676
      %v678 = vmul.f32 %v663, 1.442695
      %v679 = vpow.pop %v678
      %681 = vset.pattern.permute.xlu0 0
      %682 = vperm.xlu0 %681, %v648
      %v683 = vpop.permute.xlu0 %682
      %686 = vset.pattern.permute.xlu0 0
      %687 = vperm.xlu0 %686, %v649
      %v688 = vpop.permute.xlu0 %687
      %691 = vset.pattern.permute.xlu0 0
      %692 = vperm.xlu0 %691, %v650
      %v693 = vpop.permute.xlu0 %692
      %696 = vset.pattern.permute.xlu0 0
      %697 = vperm.xlu0 %696, %v651
      %v698 = vpop.permute.xlu0 %697
      %701 = vset.pattern.permute.xlu0 0
      %702 = vperm.xlu0 %701, %v652
      %v703 = vpop.permute.xlu0 %702
      %706 = vset.pattern.permute.xlu0 0
      %707 = vperm.xlu0 %706, %v653
      %v708 = vpop.permute.xlu0 %707
      %711 = vset.pattern.permute.xlu0 0
      %712 = vperm.xlu0 %711, %v654
      %v713 = vpop.permute.xlu0 %712
      %716 = vset.pattern.permute.xlu0 0
      %717 = vperm.xlu0 %716, %v655
      %v718 = vpop.permute.xlu0 %717
      %v720 = vsub.f32 %v616, %v683
      %v721 = vsub.f32 %v617, %v688
      %v722 = vsub.f32 %v618, %v693
      %v723 = vsub.f32 %v619, %v698
      %v724 = vsub.f32 %v620, %v703
      %v725 = vsub.f32 %v621, %v708
      %v726 = vsub.f32 %v622, %v713
      %v727 = vsub.f32 %v623, %v718
      %v728 = vmul.f32 %v720, 1.442695
      %v729 = vpow.pop %v728
      %v730 = vmul.f32 %v721, 1.442695
      %v731 = vpow.pop %v730
      %v732 = vmul.f32 %v722, 1.442695
      %v733 = vpow.pop %v732
      %v734 = vmul.f32 %v723, 1.442695
      %v735 = vpow.pop %v734
      %v736 = vmul.f32 %v724, 1.442695
      %v737 = vpow.pop %v736
      %v738 = vmul.f32 %v725, 1.442695
      %v739 = vpow.pop %v738
      %v740 = vmul.f32 %v726, 1.442695
      %v741 = vpow.pop %v740
      %v742 = vmul.f32 %v727, 1.442695
      %v743 = vpow.pop %v742
      %v744 = vld [vmem:[#allocation3] sm:$0xff]
      %v745 = vld [vmem:[#allocation3 + $0x8] sm:$0xff]
      %v746 = vld [vmem:[#allocation3 + $0x10] sm:$0xff]
      %v747 = vld [vmem:[#allocation3 + $0x18] sm:$0xff]
      %v748 = vld [vmem:[#allocation3 + $0x20] sm:$0xff]
      %v749 = vld [vmem:[#allocation3 + $0x28] sm:$0xff]
      %v750 = vld [vmem:[#allocation3 + $0x30] sm:$0xff]
      %v751 = vld [vmem:[#allocation3 + $0x38] sm:$0xff]
      %v752 = vmul.f32 %v665, %v744
      %v753 = vmul.f32 %v667, %v745
      %v754 = vmul.f32 %v669, %v746
      %v755 = vmul.f32 %v671, %v747
      %v756 = vmul.f32 %v673, %v748
      %v757 = vmul.f32 %v675, %v749
      %v758 = vmul.f32 %v677, %v750
      %v759 = vmul.f32 %v679, %v751
      %760 = vadd.xlane.f32.xlu0 %v729
      %v761 = vpop.xlane.xlu0 %760
      %762 = vadd.xlane.f32.xlu0 %v731
      %v763 = vpop.xlane.xlu0 %762
      %764 = vadd.xlane.f32.xlu0 %v733
      %v765 = vpop.xlane.xlu0 %764
      %766 = vadd.xlane.f32.xlu0 %v735
      %v767 = vpop.xlane.xlu0 %766
      %768 = vadd.xlane.f32.xlu0 %v737
      %v769 = vpop.xlane.xlu0 %768
      %770 = vadd.xlane.f32.xlu0 %v739
      %v771 = vpop.xlane.xlu0 %770
      %772 = vadd.xlane.f32.xlu0 %v741
      %v773 = vpop.xlane.xlu0 %772
      %774 = vadd.xlane.f32.xlu0 %v743
      %v775 = vpop.xlane.xlu0 %774
      %v776 = vadd.f32 %v752, %v761
      %v777 = vadd.f32 %v753, %v763
      %v778 = vadd.f32 %v754, %v765
      %v779 = vadd.f32 %v755, %v767
      %v780 = vadd.f32 %v756, %v769
      %v781 = vadd.f32 %v757, %v771
      %v782 = vadd.f32 %v758, %v773
      %v783 = vadd.f32 %v759, %v775
      %vm784 = vcmask 7168
      %785 = vst.msk [vmem:[#allocation3] sm:$0xff] %vm784, %v776
      %786 = vst.msk [vmem:[#allocation3 + $0x8] sm:$0xff] %vm784, %v777
      %787 = vst.msk [vmem:[#allocation3 + $0x10] sm:$0xff] %vm784, %v778
      %788 = vst.msk [vmem:[#allocation3 + $0x18] sm:$0xff] %vm784, %v779
      %789 = vst.msk [vmem:[#allocation3 + $0x20] sm:$0xff] %vm784, %v780
      %790 = vst.msk [vmem:[#allocation3 + $0x28] sm:$0xff] %vm784, %v781
      %791 = vst.msk [vmem:[#allocation3 + $0x30] sm:$0xff] %vm784, %v782
      %792 = vst.msk [vmem:[#allocation3 + $0x38] sm:$0xff] %vm784, %v783
      %v793 = vld [vmem:[#allocation4] sm:$0xff]
      %v794 = vld [vmem:[#allocation4 + $0x8] sm:$0xff]
      %v795 = vld [vmem:[#allocation4 + $0x10] sm:$0xff]
      %v796 = vld [vmem:[#allocation4 + $0x18] sm:$0xff]
      %v797 = vld [vmem:[#allocation4 + $0x20] sm:$0xff]
      %v798 = vld [vmem:[#allocation4 + $0x28] sm:$0xff]
      %v799 = vld [vmem:[#allocation4 + $0x30] sm:$0xff]
      %v800 = vld [vmem:[#allocation4 + $0x38] sm:$0xff]
      %802 = vset.pattern.permute.xlu0 0
      %803 = vperm.xlu0 %802, %v665
      %v804 = vpop.permute.xlu0 %803
      %807 = vset.pattern.permute.xlu0 0
      %808 = vperm.xlu0 %807, %v667
      %v809 = vpop.permute.xlu0 %808
      %812 = vset.pattern.permute.xlu0 0
      %813 = vperm.xlu0 %812, %v669
      %v814 = vpop.permute.xlu0 %813
      %817 = vset.pattern.permute.xlu0 0
      %818 = vperm.xlu0 %817, %v671
      %v819 = vpop.permute.xlu0 %818
      %822 = vset.pattern.permute.xlu0 0
      %823 = vperm.xlu0 %822, %v673
      %v824 = vpop.permute.xlu0 %823
      %827 = vset.pattern.permute.xlu0 0
      %828 = vperm.xlu0 %827, %v675
      %v829 = vpop.permute.xlu0 %828
      %832 = vset.pattern.permute.xlu0 0
      %833 = vperm.xlu0 %832, %v677
      %v834 = vpop.permute.xlu0 %833
      %837 = vset.pattern.permute.xlu0 0
      %838 = vperm.xlu0 %837, %v679
      %v839 = vpop.permute.xlu0 %838
      %v841 = vmul.f32 %v804, %v793
      %v842 = vmul.f32 %v809, %v794
      %v843 = vmul.f32 %v814, %v795
      %v844 = vmul.f32 %v819, %v796
      %v845 = vmul.f32 %v824, %v797
      %v846 = vmul.f32 %v829, %v798
      %v847 = vmul.f32 %v834, %v799
      %v848 = vmul.f32 %v839, %v800
      %v849 = vpack.c.bf16 %v731, %v729
      %v850 = vpack.c.bf16 %v735, %v733
      %v851 = vpack.c.bf16 %v739, %v737
      %v852 = vpack.c.bf16 %v743, %v741
      %v869 = vunpack.c.l.b16 %v328
      %v870 = vunpack.c.l.b16 %v329
      %v871 = vunpack.c.l.b16 %v330
      %v872 = vunpack.c.l.b16 %v331
      %v873 = vunpack.c.l.b16 %v332
      %v874 = vunpack.c.l.b16 %v333
      %v875 = vunpack.c.l.b16 %v334
      %v876 = vunpack.c.l.b16 %v335
      %v877 = vunpack.c.l.b16 %v336
      %v878 = vunpack.c.l.b16 %v337
      %v879 = vunpack.c.l.b16 %v338
      %v880 = vunpack.c.l.b16 %v339
      %v881 = vunpack.c.l.b16 %v340
      %v882 = vunpack.c.l.b16 %v341
      %v883 = vunpack.c.l.b16 %v342
      %v884 = vunpack.c.l.b16 %v343
      %v885 = vpack.c.b16 %v870, %v869
      %v886 = vpack.c.b16 %v872, %v871
      %v887 = vpack.c.b16 %v874, %v873
      %v888 = vpack.c.b16 %v876, %v875
      %v889 = vpack.c.b16 %v878, %v877
      %v890 = vpack.c.b16 %v880, %v879
      %v891 = vpack.c.b16 %v882, %v881
      %v892 = vpack.c.b16 %v884, %v883
      %901 = vmatprep.subr.bf16.mxu0 0
      %902 = vmatpush1.bf16.msra.mxu0 %v885
      %903 = vmatprep.subr.bf16.mxu0 0
      %904 = vmatpush1.bf16.msra.mxu0 %v886
      %905 = vmatprep.subr.bf16.mxu0 0
      %906 = vmatpush1.bf16.msra.mxu0 %v887
      %907 = vmatprep.subr.bf16.mxu0 0
      %908 = vmatpush1.bf16.msra.mxu0 %v888
      %909 = vmatprep.subr.bf16.mxu0 0
      %910 = vmatpush1.bf16.msra.mxu0 %v889
      %911 = vmatprep.subr.bf16.mxu0 0
      %912 = vmatpush1.bf16.msra.mxu0 %v890
      %913 = vmatprep.subr.bf16.mxu0 0
      %914 = vmatpush1.bf16.msra.mxu0 %v891
      %915 = vmatprep.subr.bf16.mxu0 0
      %916 = vmatpush1.bf16.msra.mxu0 %v892
      %917 = vmatprep.subr.bf16.mxu0 0
      %918 = vmatpush1.bf16.msra.mxu0 0
      %919 = vmatprep.subr.bf16.mxu0 0
      %920 = vmatpush1.bf16.msra.mxu0 0
      %921 = vmatprep.subr.bf16.mxu0 0
      %922 = vmatpush1.bf16.msra.mxu0 0
      %923 = vmatprep.subr.bf16.mxu0 0
      %924 = vmatpush1.bf16.msra.mxu0 0
      %925 = vmatprep.subr.bf16.mxu0 0
      %926 = vmatpush1.bf16.msra.mxu0 0
      %927 = vmatprep.subr.bf16.mxu0 0
      %928 = vmatpush1.bf16.msra.mxu0 0
      %929 = vmatprep.subr.bf16.mxu0 0
      %930 = vmatpush1.bf16.msra.mxu0 0
      %931 = vmatprep.subr.bf16.mxu0 0
      %932 = vmatpush1.bf16.msra.mxu0 0
      %933 = vmatprep.mubr.bf16.mxu0 0
      %934 = vmatmul.mubr.bf16.gmra.mrb[0].mxu0 %v849
      %v935 = vpop.f32.mrb[0].mxu0
      %v936 = vadd.f32 0.0, %v935
      %v937 = vpop.f32.mrb[0].mxu0
      %v938 = vpop.f32.mrb[0].mxu0
      %v939 = vadd.f32 0.0, %v938
      %v940 = vpop.f32.mrb[0].mxu0
      %941 = vdwg.mxu0
      %v958 = vunpack.c.l.b16 %v344
      %v959 = vunpack.c.l.b16 %v345
      %v960 = vunpack.c.l.b16 %v346
      %v961 = vunpack.c.l.b16 %v347
      %v962 = vunpack.c.l.b16 %v348
      %v963 = vunpack.c.l.b16 %v349
      %v964 = vunpack.c.l.b16 %v350
      %v965 = vunpack.c.l.b16 %v351
      %v966 = vunpack.c.l.b16 %v352
      %v967 = vunpack.c.l.b16 %v353
      %v968 = vunpack.c.l.b16 %v354
      %v969 = vunpack.c.l.b16 %v355
      %v970 = vunpack.c.l.b16 %v356
      %v971 = vunpack.c.l.b16 %v357
      %v972 = vunpack.c.l.b16 %v358
      %v973 = vunpack.c.l.b16 %v359
      %v974 = vpack.c.b16 %v959, %v958
      %v975 = vpack.c.b16 %v961, %v960
      %v976 = vpack.c.b16 %v963, %v962
      %v977 = vpack.c.b16 %v965, %v964
      %v978 = vpack.c.b16 %v967, %v966
      %v979 = vpack.c.b16 %v969, %v968
      %v980 = vpack.c.b16 %v971, %v970
      %v981 = vpack.c.b16 %v973, %v972
      %990 = vmatprep.subr.bf16.mxu0 0
      %991 = vmatpush1.bf16.msra.mxu0 %v974
      %992 = vmatprep.subr.bf16.mxu0 0
      %993 = vmatpush1.bf16.msra.mxu0 %v975
      %994 = vmatprep.subr.bf16.mxu0 0
      %995 = vmatpush1.bf16.msra.mxu0 %v976
      %996 = vmatprep.subr.bf16.mxu0 0
      %997 = vmatpush1.bf16.msra.mxu0 %v977
      %998 = vmatprep.subr.bf16.mxu0 0
      %999 = vmatpush1.bf16.msra.mxu0 %v978
      %1000 = vmatprep.subr.bf16.mxu0 0
      %1001 = vmatpush1.bf16.msra.mxu0 %v979
      %1002 = vmatprep.subr.bf16.mxu0 0
      %1003 = vmatpush1.bf16.msra.mxu0 %v980
      %1004 = vmatprep.subr.bf16.mxu0 0
      %1005 = vmatpush1.bf16.msra.mxu0 %v981
      %1006 = vmatprep.subr.bf16.mxu0 0
      %1007 = vmatpush1.bf16.msra.mxu0 0
      %1008 = vmatprep.subr.bf16.mxu0 0
      %1009 = vmatpush1.bf16.msra.mxu0 0
      %1010 = vmatprep.subr.bf16.mxu0 0
      %1011 = vmatpush1.bf16.msra.mxu0 0
      %1012 = vmatprep.subr.bf16.mxu0 0
      %1013 = vmatpush1.bf16.msra.mxu0 0
      %1014 = vmatprep.subr.bf16.mxu0 0
      %1015 = vmatpush1.bf16.msra.mxu0 0
      %1016 = vmatprep.subr.bf16.mxu0 0
      %1017 = vmatpush1.bf16.msra.mxu0 0
      %1018 = vmatprep.subr.bf16.mxu0 0
      %1019 = vmatpush1.bf16.msra.mxu0 0
      %1020 = vmatprep.subr.bf16.mxu0 0
      %1021 = vmatpush1.bf16.msra.mxu0 0
      %1022 = vmatprep.mubr.bf16.mxu0 0
      %1023 = vmatmul.mubr.bf16.gmra.mrb[0].mxu0 %v850
      %v1024 = vpop.f32.mrb[0].mxu0
      %v1025 = vadd.f32 0.0, %v1024
      %v1026 = vpop.f32.mrb[0].mxu0
      %v1027 = vpop.f32.mrb[0].mxu0
      %v1028 = vadd.f32 0.0, %v1027
      %v1029 = vpop.f32.mrb[0].mxu0
      %1030 = vdwg.mxu0
      %v1047 = vunpack.c.l.b16 %v360
      %v1048 = vunpack.c.l.b16 %v361
      %v1049 = vunpack.c.l.b16 %v362
      %v1050 = vunpack.c.l.b16 %v363
      %v1051 = vunpack.c.l.b16 %v364
      %v1052 = vunpack.c.l.b16 %v365
      %v1053 = vunpack.c.l.b16 %v366
      %v1054 = vunpack.c.l.b16 %v367
      %v1055 = vunpack.c.l.b16 %v368
      %v1056 = vunpack.c.l.b16 %v369
      %v1057 = vunpack.c.l.b16 %v370
      %v1058 = vunpack.c.l.b16 %v371
      %v1059 = vunpack.c.l.b16 %v372
      %v1060 = vunpack.c.l.b16 %v373
      %v1061 = vunpack.c.l.b16 %v374
      %v1062 = vunpack.c.l.b16 %v375
      %v1063 = vpack.c.b16 %v1048, %v1047
      %v1064 = vpack.c.b16 %v1050, %v1049
      %v1065 = vpack.c.b16 %v1052, %v1051
      %v1066 = vpack.c.b16 %v1054, %v1053
      %v1067 = vpack.c.b16 %v1056, %v1055
      %v1068 = vpack.c.b16 %v1058, %v1057
      %v1069 = vpack.c.b16 %v1060, %v1059
      %v1070 = vpack.c.b16 %v1062, %v1061
      %1079 = vmatprep.subr.bf16.mxu0 0
      %1080 = vmatpush1.bf16.msra.mxu0 %v1063
      %1081 = vmatprep.subr.bf16.mxu0 0
      %1082 = vmatpush1.bf16.msra.mxu0 %v1064
      %1083 = vmatprep.subr.bf16.mxu0 0
      %1084 = vmatpush1.bf16.msra.mxu0 %v1065
      %1085 = vmatprep.subr.bf16.mxu0 0
      %1086 = vmatpush1.bf16.msra.mxu0 %v1066
      %1087 = vmatprep.subr.bf16.mxu0 0
      %1088 = vmatpush1.bf16.msra.mxu0 %v1067
      %1089 = vmatprep.subr.bf16.mxu0 0
      %1090 = vmatpush1.bf16.msra.mxu0 %v1068
      %1091 = vmatprep.subr.bf16.mxu0 0
      %1092 = vmatpush1.bf16.msra.mxu0 %v1069
      %1093 = vmatprep.subr.bf16.mxu0 0
      %1094 = vmatpush1.bf16.msra.mxu0 %v1070
      %1095 = vmatprep.subr.bf16.mxu0 0
      %1096 = vmatpush1.bf16.msra.mxu0 0
      %1097 = vmatprep.subr.bf16.mxu0 0
      %1098 = vmatpush1.bf16.msra.mxu0 0
      %1099 = vmatprep.subr.bf16.mxu0 0
      %1100 = vmatpush1.bf16.msra.mxu0 0
      %1101 = vmatprep.subr.bf16.mxu0 0
      %1102 = vmatpush1.bf16.msra.mxu0 0
      %1103 = vmatprep.subr.bf16.mxu0 0
      %1104 = vmatpush1.bf16.msra.mxu0 0
      %1105 = vmatprep.subr.bf16.mxu0 0
      %1106 = vmatpush1.bf16.msra.mxu0 0
      %1107 = vmatprep.subr.bf16.mxu0 0
      %1108 = vmatpush1.bf16.msra.mxu0 0
      %1109 = vmatprep.subr.bf16.mxu0 0
      %1110 = vmatpush1.bf16.msra.mxu0 0
      %1111 = vmatprep.mubr.bf16.mxu0 0
      %1112 = vmatmul.mubr.bf16.gmra.mrb[0].mxu0 %v851
      %v1113 = vpop.f32.mrb[0].mxu0
      %v1114 = vadd.f32 0.0, %v1113
      %v1115 = vpop.f32.mrb[0].mxu0
      %v1116 = vpop.f32.mrb[0].mxu0
      %v1117 = vadd.f32 0.0, %v1116
      %v1118 = vpop.f32.mrb[0].mxu0
      %1119 = vdwg.mxu0
      %v1136 = vunpack.c.l.b16 %v376
      %v1137 = vunpack.c.l.b16 %v377
      %v1138 = vunpack.c.l.b16 %v378
      %v1139 = vunpack.c.l.b16 %v379
      %v1140 = vunpack.c.l.b16 %v380
      %v1141 = vunpack.c.l.b16 %v381
      %v1142 = vunpack.c.l.b16 %v382
      %v1143 = vunpack.c.l.b16 %v383
      %v1144 = vunpack.c.l.b16 %v384
      %v1145 = vunpack.c.l.b16 %v385
      %v1146 = vunpack.c.l.b16 %v386
      %v1147 = vunpack.c.l.b16 %v387
      %v1148 = vunpack.c.l.b16 %v388
      %v1149 = vunpack.c.l.b16 %v389
      %v1150 = vunpack.c.l.b16 %v390
      %v1151 = vunpack.c.l.b16 %v391
      %v1152 = vpack.c.b16 %v1137, %v1136
      %v1153 = vpack.c.b16 %v1139, %v1138
      %v1154 = vpack.c.b16 %v1141, %v1140
      %v1155 = vpack.c.b16 %v1143, %v1142
      %v1156 = vpack.c.b16 %v1145, %v1144
      %v1157 = vpack.c.b16 %v1147, %v1146
      %v1158 = vpack.c.b16 %v1149, %v1148
      %v1159 = vpack.c.b16 %v1151, %v1150
      %1168 = vmatprep.subr.bf16.mxu0 0
      %1169 = vmatpush1.bf16.msra.mxu0 %v1152
      %1170 = vmatprep.subr.bf16.mxu0 0
      %1171 = vmatpush1.bf16.msra.mxu0 %v1153
      %1172 = vmatprep.subr.bf16.mxu0 0
      %1173 = vmatpush1.bf16.msra.mxu0 %v1154
      %1174 = vmatprep.subr.bf16.mxu0 0
      %1175 = vmatpush1.bf16.msra.mxu0 %v1155
      %1176 = vmatprep.subr.bf16.mxu0 0
      %1177 = vmatpush1.bf16.msra.mxu0 %v1156
      %1178 = vmatprep.subr.bf16.mxu0 0
      %1179 = vmatpush1.bf16.msra.mxu0 %v1157
      %1180 = vmatprep.subr.bf16.mxu0 0
      %1181 = vmatpush1.bf16.msra.mxu0 %v1158
      %1182 = vmatprep.subr.bf16.mxu0 0
      %1183 = vmatpush1.bf16.msra.mxu0 %v1159
      %1184 = vmatprep.subr.bf16.mxu0 0
      %1185 = vmatpush1.bf16.msra.mxu0 0
      %1186 = vmatprep.subr.bf16.mxu0 0
      %1187 = vmatpush1.bf16.msra.mxu0 0
      %1188 = vmatprep.subr.bf16.mxu0 0
      %1189 = vmatpush1.bf16.msra.mxu0 0
      %1190 = vmatprep.subr.bf16.mxu0 0
      %1191 = vmatpush1.bf16.msra.mxu0 0
      %1192 = vmatprep.subr.bf16.mxu0 0
      %1193 = vmatpush1.bf16.msra.mxu0 0
      %1194 = vmatprep.subr.bf16.mxu0 0
      %1195 = vmatpush1.bf16.msra.mxu0 0
      %1196 = vmatprep.subr.bf16.mxu0 0
      %1197 = vmatpush1.bf16.msra.mxu0 0
      %1198 = vmatprep.subr.bf16.mxu0 0
      %1199 = vmatpush1.bf16.msra.mxu0 0
      %1200 = vmatprep.mubr.bf16.mxu0 0
      %1201 = vmatmul.mubr.bf16.gmra.mrb[0].mxu0 %v852
      %v1202 = vpop.f32.mrb[0].mxu0
      %v1203 = vadd.f32 0.0, %v1202
      %v1204 = vpop.f32.mrb[0].mxu0
      %v1205 = vpop.f32.mrb[0].mxu0
      %v1206 = vadd.f32 0.0, %v1205
      %v1207 = vpop.f32.mrb[0].mxu0
      %1208 = vdwg.mxu0
      %v1209 = vadd.f32 %v841, %v936
      %v1210 = vadd.f32 %v842, %v939
      %v1211 = vadd.f32 %v843, %v1025
      %v1212 = vadd.f32 %v844, %v1028
      %v1213 = vadd.f32 %v845, %v1114
      %v1214 = vadd.f32 %v846, %v1117
      %v1215 = vadd.f32 %v847, %v1203
      %v1216 = vadd.f32 %v848, %v1206
      %1217 = vst.msk [vmem:[#allocation4] sm:$0xff] %vm405, %v1209
      %1218 = vst.msk [vmem:[#allocation4 + $0x8] sm:$0xff] %vm405, %v1210
      %1219 = vst.msk [vmem:[#allocation4 + $0x10] sm:$0xff] %vm405, %v1211
      %1220 = vst.msk [vmem:[#allocation4 + $0x18] sm:$0xff] %vm405, %v1212
      %1221 = vst.msk [vmem:[#allocation4 + $0x20] sm:$0xff] %vm405, %v1213
      %1222 = vst.msk [vmem:[#allocation4 + $0x28] sm:$0xff] %vm405, %v1214
      %1223 = vst.msk [vmem:[#allocation4 + $0x30] sm:$0xff] %vm405, %v1215
      %1224 = vst.msk [vmem:[#allocation4 + $0x38] sm:$0xff] %vm405, %v1216
      %1225 = vst.msk [vmem:[#allocation2] sm:$0xff] %vm784, %v648
      %1226 = vst.msk [vmem:[#allocation2 + $0x8] sm:$0xff] %vm784, %v649
      %1227 = vst.msk [vmem:[#allocation2 + $0x10] sm:$0xff] %vm784, %v650
      %1228 = vst.msk [vmem:[#allocation2 + $0x18] sm:$0xff] %vm784, %v651
      %1229 = vst.msk [vmem:[#allocation2 + $0x20] sm:$0xff] %vm784, %v652
      %1230 = vst.msk [vmem:[#allocation2 + $0x28] sm:$0xff] %vm784, %v653
      %1231 = vst.msk [vmem:[#allocation2 + $0x30] sm:$0xff] %vm784, %v654
      %1232 = vst.msk [vmem:[#allocation2 + $0x38] sm:$0xff] %vm784, %v655
      // Predicated region
      $region37: #{tpu_custom_call.1} parent=31 // pred_check
        %p1233 = pneg %p286
      $region38: #{tpu_custom_call.1} parent=31 // pred_check_branch
        %1235 = sbr.rel (%p1233) target = $region40
      $region39: #{tpu_custom_call.1} parent=31 // pred_region
        %v1236 = vld [vmem:[#allocation3] sm:$0xff]
        %v1237 = vld [vmem:[#allocation3 + $0x8] sm:$0xff]
        %v1238 = vld [vmem:[#allocation3 + $0x10] sm:$0xff]
        %v1239 = vld [vmem:[#allocation3 + $0x18] sm:$0xff]
        %v1240 = vld [vmem:[#allocation3 + $0x20] sm:$0xff]
        %v1241 = vld [vmem:[#allocation3 + $0x28] sm:$0xff]
        %v1242 = vld [vmem:[#allocation3 + $0x30] sm:$0xff]
        %v1243 = vld [vmem:[#allocation3 + $0x38] sm:$0xff]
        %v1244 = vrcp.pop %v1236
        %v1245 = vrcp.pop %v1237
        %v1246 = vrcp.pop %v1238
        %v1247 = vrcp.pop %v1239
        %v1248 = vrcp.pop %v1240
        %v1249 = vrcp.pop %v1241
        %v1250 = vrcp.pop %v1242
        %v1251 = vrcp.pop %v1243
        %v1252 = vld [vmem:[#allocation4] sm:$0xff]
        %v1253 = vld [vmem:[#allocation4 + $0x8] sm:$0xff]
        %v1254 = vld [vmem:[#allocation4 + $0x10] sm:$0xff]
        %v1255 = vld [vmem:[#allocation4 + $0x18] sm:$0xff]
        %v1256 = vld [vmem:[#allocation4 + $0x20] sm:$0xff]
        %v1257 = vld [vmem:[#allocation4 + $0x28] sm:$0xff]
        %v1258 = vld [vmem:[#allocation4 + $0x30] sm:$0xff]
        %v1259 = vld [vmem:[#allocation4 + $0x38] sm:$0xff]
        %1261 = vset.pattern.permute.xlu0 0
        %1262 = vperm.xlu0 %1261, %v1244
        %v1263 = vpop.permute.xlu0 %1262
        %1266 = vset.pattern.permute.xlu0 0
        %1267 = vperm.xlu0 %1266, %v1245
        %v1268 = vpop.permute.xlu0 %1267
        %1271 = vset.pattern.permute.xlu0 0
        %1272 = vperm.xlu0 %1271, %v1246
        %v1273 = vpop.permute.xlu0 %1272
        %1276 = vset.pattern.permute.xlu0 0
        %1277 = vperm.xlu0 %1276, %v1247
        %v1278 = vpop.permute.xlu0 %1277
        %1281 = vset.pattern.permute.xlu0 0
        %1282 = vperm.xlu0 %1281, %v1248
        %v1283 = vpop.permute.xlu0 %1282
        %1286 = vset.pattern.permute.xlu0 0
        %1287 = vperm.xlu0 %1286, %v1249
        %v1288 = vpop.permute.xlu0 %1287
        %1291 = vset.pattern.permute.xlu0 0
        %1292 = vperm.xlu0 %1291, %v1250
        %v1293 = vpop.permute.xlu0 %1292
        %1296 = vset.pattern.permute.xlu0 0
        %1297 = vperm.xlu0 %1296, %v1251
        %v1298 = vpop.permute.xlu0 %1297
        %v1300 = vmul.f32 %v1252, %v1263
        %v1301 = vmul.f32 %v1253, %v1268
        %v1302 = vmul.f32 %v1254, %v1273
        %v1303 = vmul.f32 %v1255, %v1278
        %v1304 = vmul.f32 %v1256, %v1283
        %v1305 = vmul.f32 %v1257, %v1288
        %v1306 = vmul.f32 %v1258, %v1293
        %v1307 = vmul.f32 %v1259, %v1298
        %1308 = vst.msk [vmem:[%s282] sm:$0xff] %vm405, %v1300
        %1309 = vst.msk [vmem:[%s282 + $0x8] sm:$0xff] %vm405, %v1301
        %1310 = vst.msk [vmem:[%s282 + $0x10] sm:$0xff] %vm405, %v1302
        %1311 = vst.msk [vmem:[%s282 + $0x18] sm:$0xff] %vm405, %v1303
        %1312 = vst.msk [vmem:[%s282 + $0x20] sm:$0xff] %vm405, %v1304
        %1313 = vst.msk [vmem:[%s282 + $0x28] sm:$0xff] %vm405, %v1305
        %1314 = vst.msk [vmem:[%s282 + $0x30] sm:$0xff] %vm405, %v1306
        %1315 = vst.msk [vmem:[%s282 + $0x38] sm:$0xff] %vm405, %v1307
      $region40: #{tpu_custom_call.1} parent=31 // pred_fallthru
        _
      %s1316 = smul.u32 2, %s20
      %p1317 = scmp.lt.s32.totalorder %s19, 1
      %s1318 = scalar_select %p1317, %s19, 1
      %p1319 = scmp.lt.s32.totalorder %s1316, 1
      %s1320 = scalar_select %p1319, %s1316, 1
      %s1321 = smul.addr %s1318, 8
      %s1322 = sadd.s32 %s1320, %s1321
      %s1323 = smul.addr %s1322, 8
      %s1324 = scalar_lea.vmem %s3, %s1323
      // Predicated region
      $region41: #{tpu_custom_call.1} parent=31 // pred_check
        %p1325 = pneg %p137
      $region42: #{tpu_custom_call.1} parent=31 // pred_check_branch
        %1327 = sbr.rel (%p1325) target = $region44
      $region43: #{tpu_custom_call.1} parent=31 // pred_region
        %s1328 = smul.u32 2, %s20
      $region44: #{tpu_custom_call.1} parent=31 // pred_fallthru
        _
    $region32: #{tpu_custom_call.1} parent=5 // pred_fallthru
      _
    %p1329 = scmp.le.s32.totalorder 2, %s9
    // Predicated region
    $region45: #{tpu_custom_call.1} parent=5 // pred_check
      %p1330 = pneg %p1329
    $region46: #{tpu_custom_call.1} parent=5 // pred_check_branch
      %1332 = sbr.rel (%p1330) target = $region48
    $region47: #{tpu_custom_call.1} parent=5 // pred_region
      %s1333 = ssub.s32 %s9, 2
      // Predicated region
      $region49: #{tpu_custom_call.1} parent=47 // pred_check
        %p1334 = pneg %p143
      $region50: #{tpu_custom_call.1} parent=47 // pred_check_branch
        %1336 = sbr.rel (%p1334) target = $region52
      $region51: #{tpu_custom_call.1} parent=47 // pred_region
        %s1337 = smul.u32 2, %s23
        %p1338 = scmp.lt.s32.totalorder %s22, 1
        %s1339 = scalar_select %p1338, %s22, 1
        %p1340 = scmp.lt.s32.totalorder %s1337, 1
        %s1341 = scalar_select %p1340, %s1337, 1
        %s1342 = smul.addr %s1339, 8
        %s1343 = sadd.s32 %s1341, %s1342
        %s1344 = smul.addr %s1343, 8
        %s1345 = scalar_lea.vmem %s3, %s1344
      $region52: #{tpu_custom_call.1} parent=47 // pred_fallthru
        _
    $region48: #{tpu_custom_call.1} parent=5 // pred_fallthru
      _
  $region6: #{tpu_custom_call.1} parent=0 // loop_footer
    %s13 = sadd.s32 1, %s9
  $region7: #{tpu_custom_call.1} parent=0 // loop_footer_branch
    %8 = sbr.rel target = $region3
  $region8: #{tpu_custom_call.1} parent=0 // loop_exit
    _

</llo_original>
